<compile_context>
chip_gen: v7x
topology: tpu7x:2x2x1
jax: 0.10.0
libtpu: 0.0.40
codegen_flags: <defaults>
</compile_context>

<pallas_src>
import functools

import jax
import jax.numpy as jnp
from jax.experimental import pallas as pl
from jax.experimental.pallas import tpu as pltpu


def _block_kernel(n_heads, seq_len, q_tile,
                  x_ref,
                  ln1w_ref, ln1b_ref,
                  wqkv_ref, bqkv_ref,
                  wp_ref, bp_ref,
                  ln2w_ref, ln2b_ref,
                  w1_ref, b1_ref, w2_ref, b2_ref,
                  o_ref,
                  q_sc, k_sc, v_sc):
    T = seq_len
    TQ = q_tile
    E = x_ref.shape[2]
    H = n_heads
    hs = E // H
    t = pl.program_id(1)
    scale = float(E) ** (-0.5)  # PyTorch Head scales by C**-0.5 with C = n_embd

    def layernorm(v, w, b):
        mu = jnp.mean(v, axis=-1, keepdims=True)
        var = jnp.mean((v - mu) ** 2, axis=-1, keepdims=True)
        return (v - mu) * jax.lax.rsqrt(var + 1e-5) * w + b

    ln1w = ln1w_ref[0]
    ln1b = ln1b_ref[0]

    # ---- once per batch element (first query tile): LN1 over the full sequence and
    #      ONE fused bf16 QKV projection, cached head-major in VMEM scratch.
    @pl.when(t == 0)
    def _():
        xn_full = layernorm(x_ref[0].astype(jnp.float32), ln1w, ln1b)        # (T, E) f32
        qkv = jnp.dot(xn_full.astype(jnp.bfloat16), wqkv_ref[...],
                      preferred_element_type=jnp.float32) + bqkv_ref[0]      # (T, 3E) f32
        for h in range(H):                                                   # static unroll
            q_sc[h, :, :] = (qkv[:, h * hs:(h + 1) * hs] * scale).astype(jnp.bfloat16)
            k_sc[h, :, :] = qkv[:, E + h * hs:E + (h + 1) * hs].astype(jnp.bfloat16)
            v_sc[h, :, :] = qkv[:, 2 * E + h * hs:2 * E + (h + 1) * hs].astype(jnp.bfloat16)

    row0 = pl.multiple_of(t * TQ, TQ)

    # Post-LN1 activations for this query tile (recomputed row-wise: cheap, exact,
    # and avoids a (T, E) f32 scratch for the residual path).
    x_tile = x_ref[0, pl.ds(row0, TQ), :].astype(jnp.float32)                # (TQ, E)
    xn_tile = layernorm(x_tile, ln1w, ln1b)

    q3 = q_sc[:, pl.ds(row0, TQ), :]                                         # (H, TQ, hs) bf16
    k3 = k_sc[...]                                                           # (H, T, hs)  bf16
    v3 = v_sc[...]                                                           # (H, T, hs)  bf16

    # Scores for all heads in one batched contraction (Q already carries 1/sqrt(E)).
    s = jnp.einsum('hqd,hkd->hqk', q3, k3,
                   preferred_element_type=jnp.float32)                       # (H, TQ, T) f32

    # Causal mask for this (TQ, T) tile only.
    rows = row0 + jax.lax.broadcasted_iota(jnp.int32, (TQ, T), 0)
    cols = jax.lax.broadcasted_iota(jnp.int32, (TQ, T), 1)
    s = jnp.where((cols <= rows)[None, :, :], s, -1e30)

    # Softmax in f32; denominator reciprocal goes to the EUP slot.
    m = jnp.max(s, axis=-1, keepdims=True)
    e = jnp.exp(s - m)
    denom = jnp.sum(e, axis=-1, keepdims=True)
    p = e * pl.reciprocal(denom, approx=True)                                # (H, TQ, T)

    ctx = jnp.einsum('hqk,hkd->hqd', p.astype(jnp.bfloat16), v3,
                     preferred_element_type=jnp.float32)                     # (H, TQ, hs) f32
    ctx = jnp.concatenate([ctx[h] for h in range(H)], axis=-1)               # (TQ, E)

    attn = jnp.dot(ctx.astype(jnp.bfloat16), wp_ref[...],
                   preferred_element_type=jnp.float32) + bp_ref[0]

    # Residuals exactly as the PyTorch module: x2 = ln1(x) + sa(ln1(x)); out = ln2(x2) + ffwd(ln2(x2))
    x2 = xn_tile + attn
    xn2 = layernorm(x2, ln2w_ref[0], ln2b_ref[0])

    h1 = jnp.maximum(
        jnp.dot(xn2.astype(jnp.bfloat16), w1_ref[...],
                preferred_element_type=jnp.float32) + b1_ref[0], 0.0)
    ff = jnp.dot(h1.astype(jnp.bfloat16), w2_ref[...],
                 preferred_element_type=jnp.float32) + b2_ref[0]

    o_ref[0] = (xn2 + ff).astype(o_ref.dtype)


def block_forward(x, params, n_heads, q_tile=None):
    B, T, E = x.shape
    H = n_heads
    hs = E // H

    if q_tile is None:
        q_tile = T
        for cand in (256, 128, 64, 32, 16, 8):
            if T % cand == 0:
                q_tile = cand
                break
    assert T % q_tile == 0
    NT = T // q_tile

    f32, bf16 = jnp.float32, jnp.bfloat16

    # Fused QKV weight / bias (host-side concat); matmul weights in bf16, the rest f32.
    wqkv = jnp.concatenate([params["wq"], params["wk"], params["wv"]], axis=1).astype(bf16)
    bqkv = jnp.concatenate([params["bq"], params["bk"], params["bv"]]).reshape(1, -1).astype(f32)

    def vec(p):
        return p.reshape(1, -1).astype(f32)

    ordered = [
        vec(params["ln1_w"]), vec(params["ln1_b"]),
        wqkv, bqkv,
        params["wp"].astype(bf16), vec(params["bp"]),
        vec(params["ln2_w"]), vec(params["ln2_b"]),
        params["w1"].astype(bf16), vec(params["b1"]),
        params["w2"].astype(bf16), vec(params["b2"]),
    ]

    def full_spec(a):
        nd = a.ndim
        return pl.BlockSpec(a.shape, lambda b, t, _nd=nd: (0,) * _nd)

    in_specs = ([pl.BlockSpec((1, T, E), lambda b, t: (b, 0, 0))]
                + [full_spec(a) for a in ordered])

    return pl.pallas_call(
        functools.partial(_block_kernel, n_heads, T, q_tile),
        out_shape=jax.ShapeDtypeStruct((B, T, E), x.dtype),
        grid_spec=pltpu.PrefetchScalarGridSpec(
            num_scalar_prefetch=0,
            grid=(B, NT),
            in_specs=in_specs,
            out_specs=pl.BlockSpec((1, q_tile, E), lambda b, t: (b, t, 0)),
            scratch_shapes=[
                pltpu.VMEM((H, T, hs), bf16),   # Q (pre-scaled), head-major
                pltpu.VMEM((H, T, hs), bf16),   # K
                pltpu.VMEM((H, T, hs), bf16),   # V
            ],
        ),
        compiler_params=pltpu.CompilerParams(
            # query-tile axis must be sequential: K/V scratch is a per-batch carry
            dimension_semantics=("parallel", "arbitrary"),
            vmem_limit_bytes=48 * 1024 * 1024,
        ),
    )(x, *ordered)


def block_reference(x, params, n_heads):
    """Pure-JAX f32 reference of the PyTorch Block forward (eval mode)."""
    B, T, E = x.shape
    H = n_heads
    hs = E // H

    def ln(v, w, b):
        mu = jnp.mean(v, axis=-1, keepdims=True)
        var = jnp.mean((v - mu) ** 2, axis=-1, keepdims=True)
        return (v - mu) / jnp.sqrt(var + 1e-5) * w + b

    xn = ln(x, params["ln1_w"], params["ln1_b"])
    q = xn @ params["wq"] + params["bq"]
    k = xn @ params["wk"] + params["bk"]
    v = xn @ params["wv"] + params["bv"]

    tril = jnp.tril(jnp.ones((T, T), dtype=bool))
    outs = []
    for h in range(H):
        qh, kh, vh = (a[..., h * hs:(h + 1) * hs] for a in (q, k, v))
        wei = jnp.einsum("btd,bsd->bts", qh, kh) * (float(E) ** -0.5)
        wei = jnp.where(tril, wei, -jnp.inf)
        wei = jax.nn.softmax(wei, axis=-1)
        outs.append(jnp.einsum("bts,bsd->btd", wei, vh))
    attn = jnp.concatenate(outs, axis=-1) @ params["wp"] + params["bp"]

    x2 = xn + attn
    xn2 = ln(x2, params["ln2_w"], params["ln2_b"])
    ff = jnp.maximum(xn2 @ params["w1"] + params["b1"], 0.0) @ params["w2"] + params["b2"]
    return xn2 + ff


def make_params(key, n_embd):
    E = n_embd
    ks = jax.random.split(key, 12)
    s = 0.02
    return {
        "ln1_w": jnp.ones((E,), jnp.float32),
        "ln1_b": jnp.zeros((E,), jnp.float32),
        "wq": s * jax.random.normal(ks[0], (E, E), jnp.float32),
        "bq": s * jax.random.normal(ks[1], (E,), jnp.float32),
        "wk": s * jax.random.normal(ks[2], (E, E), jnp.float32),
        "bk": s * jax.random.normal(ks[3], (E,), jnp.float32),
        "wv": s * jax.random.normal(ks[4], (E, E), jnp.float32),
        "bv": s * jax.random.normal(ks[5], (E,), jnp.float32),
        "wp": s * jax.random.normal(ks[6], (E, E), jnp.float32),
        "bp": s * jax.random.normal(ks[7], (E,), jnp.float32),
        "ln2_w": jnp.ones((E,), jnp.float32),
        "ln2_b": jnp.zeros((E,), jnp.float32),
        "w1": s * jax.random.normal(ks[8], (E, 4 * E), jnp.float32),
        "b1": s * jax.random.normal(ks[9], (4 * E,), jnp.float32),
        "w2": s * jax.random.normal(ks[10], (4 * E, E), jnp.float32),
        "b2": s * jax.random.normal(ks[11], (E,), jnp.float32),
    }


if __name__ == "__main__":
    key = jax.random.PRNGKey(0)
    kx, kp, kx2 = jax.random.split(key, 3)

    # Config 1: B=2, T=8, E=32, H=4 (single query tile per batch element).
    B, T, E, H = 2, 8, 32, 4
    params = make_params(kp, E)
    x = jax.random.normal(kx, (B, T, E), jnp.float32)

    out = jax.block_until_ready(block_forward(x, params, H))
    ref = block_reference(x, params, H)
    assert out.shape == (B, T, E)
    err = float(jnp.max(jnp.abs(out - ref)))
    # bf16 MXU inputs + approx reciprocal -> compare at bf16-appropriate tolerance
    assert jnp.allclose(out, ref, rtol=2e-2, atol=2e-2), f"mismatch vs reference (max abs err {err})"

    # Config 2: T=16 with an explicit query tile of 8 -> exercises the (B, T//TQ) grid
    # and the cached-K/V path across multiple query tiles.
    T2 = 16
    x2 = jax.random.normal(kx2, (B, T2, E), jnp.float32)
    out2 = jax.block_until_ready(block_forward(x2, params, H, q_tile=8))
    ref2 = block_reference(x2, params, H)
    err2 = float(jnp.max(jnp.abs(out2 - ref2)))
    assert jnp.allclose(out2, ref2, rtol=2e-2, atol=2e-2), f"tiled mismatch (max abs err {err2})"

    print("KERNEL_OK")
</pallas_src>

<mosaic_0001>
module attributes {stable_mosaic.version = 11 : i64} {
  func.func @_block_kernel(%arg0: i32, %arg1: i32, %arg2: memref<1x8x32xf32, #tpu.memory_space<vmem>>, %arg3: memref<1x32xf32, #tpu.memory_space<vmem>>, %arg4: memref<1x32xf32, #tpu.memory_space<vmem>>, %arg5: memref<32x96xbf16, #tpu.memory_space<vmem>>, %arg6: memref<1x96xf32, #tpu.memory_space<vmem>>, %arg7: memref<32x32xbf16, #tpu.memory_space<vmem>>, %arg8: memref<1x32xf32, #tpu.memory_space<vmem>>, %arg9: memref<1x32xf32, #tpu.memory_space<vmem>>, %arg10: memref<1x32xf32, #tpu.memory_space<vmem>>, %arg11: memref<32x128xbf16, #tpu.memory_space<vmem>>, %arg12: memref<1x128xf32, #tpu.memory_space<vmem>>, %arg13: memref<128x32xbf16, #tpu.memory_space<vmem>>, %arg14: memref<1x32xf32, #tpu.memory_space<vmem>>, %arg15: memref<1x8x32xf32, #tpu.memory_space<vmem>>, %arg16: memref<4x8x8xbf16, #tpu.memory_space<vmem>>, %arg17: memref<4x8x8xbf16, #tpu.memory_space<vmem>>, %arg18: memref<4x8x8xbf16, #tpu.memory_space<vmem>>) attributes {dimension_semantics = [#tpu.dimension_semantics<parallel>, #tpu.dimension_semantics<arbitrary>], iteration_bounds = array<i64: 2, 1>, scalar_prefetch = 0 : i64, scratch_operands = 3 : i64, tpu.core_type = #tpu.core_type<tc>, window_params = [{transform_indices = @transform_0, window_bounds = array<i64: 1, 8, 32>}, {pipeline_mode = #tpu.pipeline_mode<synchronous>, transform_indices = @transform_1, window_bounds = array<i64: 1, 32>}, {pipeline_mode = #tpu.pipeline_mode<synchronous>, transform_indices = @transform_2, window_bounds = array<i64: 1, 32>}, {pipeline_mode = #tpu.pipeline_mode<synchronous>, transform_indices = @transform_3, window_bounds = array<i64: 32, 96>}, {pipeline_mode = #tpu.pipeline_mode<synchronous>, transform_indices = @transform_4, window_bounds = array<i64: 1, 96>}, {pipeline_mode = #tpu.pipeline_mode<synchronous>, transform_indices = @transform_5, window_bounds = array<i64: 32, 32>}, {pipeline_mode = #tpu.pipeline_mode<synchronous>, transform_indices = @transform_6, window_bounds = array<i64: 1, 32>}, {pipeline_mode = #tpu.pipeline_mode<synchronous>, transform_indices = @transform_7, window_bounds = array<i64: 1, 32>}, {pipeline_mode = #tpu.pipeline_mode<synchronous>, transform_indices = @transform_8, window_bounds = array<i64: 1, 32>}, {pipeline_mode = #tpu.pipeline_mode<synchronous>, transform_indices = @transform_9, window_bounds = array<i64: 32, 128>}, {pipeline_mode = #tpu.pipeline_mode<synchronous>, transform_indices = @transform_10, window_bounds = array<i64: 1, 128>}, {pipeline_mode = #tpu.pipeline_mode<synchronous>, transform_indices = @transform_11, window_bounds = array<i64: 128, 32>}, {pipeline_mode = #tpu.pipeline_mode<synchronous>, transform_indices = @transform_12, window_bounds = array<i64: 1, 32>}, {transform_indices = @transform_13, window_bounds = array<i64: 1, 8, 32>}]} {
    %c0 = arith.constant 0 : index
    %c0_0 = arith.constant 0 : index
    %0 = vector.load %arg3[%c0, %c0_0] : memref<1x32xf32, #tpu.memory_space<vmem>>, vector<1x32xf32>
    %1 = vector.shape_cast %0 : vector<1x32xf32> to vector<32xf32>
    %c0_1 = arith.constant 0 : index
    %c0_2 = arith.constant 0 : index
    %2 = vector.load %arg4[%c0_1, %c0_2] : memref<1x32xf32, #tpu.memory_space<vmem>>, vector<1x32xf32>
    %3 = vector.shape_cast %2 : vector<1x32xf32> to vector<32xf32>
    %c0_i32 = arith.constant 0 : i32
    %4 = arith.cmpi eq, %arg1, %c0_i32 : i32
    %5 = arith.extui %4 : i1 to i32
    %c0_i32_3 = arith.constant 0 : i32
    %6 = arith.cmpi ne, %5, %c0_i32_3 : i32
    scf.if %6 {
      %c0_51 = arith.constant 0 : index
      %c0_52 = arith.constant 0 : index
      %c0_53 = arith.constant 0 : index
      %131 = vector.load %arg2[%c0_51, %c0_52, %c0_53] : memref<1x8x32xf32, #tpu.memory_space<vmem>>, vector<1x8x32xf32>
      %132 = vector.shape_cast %131 : vector<1x8x32xf32> to vector<8x32xf32>
      %cst_54 = arith.constant dense<0.000000e+00> : vector<8xf32>
      %133 = vector.multi_reduction <add>, %132, %cst_54 [1] : vector<8x32xf32> to vector<8xf32>
      %134 = vector.shape_cast %133 : vector<8xf32> to vector<8x1xf32>
      %cst_55 = arith.constant 3.200000e+01 : f32
      %135 = vector.broadcast %cst_55 : f32 to vector<8x1xf32>
      %136 = arith.divf %134, %135 : vector<8x1xf32>
      %137 = vector.broadcast %136 : vector<8x1xf32> to vector<8x32xf32>
      %138 = arith.subf %132, %137 : vector<8x32xf32>
      %139 = arith.mulf %138, %138 : vector<8x32xf32>
      %cst_56 = arith.constant dense<0.000000e+00> : vector<8xf32>
      %140 = vector.multi_reduction <add>, %139, %cst_56 [1] : vector<8x32xf32> to vector<8xf32>
      %141 = vector.shape_cast %140 : vector<8xf32> to vector<8x1xf32>
      %cst_57 = arith.constant 3.200000e+01 : f32
      %142 = vector.broadcast %cst_57 : f32 to vector<8x1xf32>
      %143 = arith.divf %141, %142 : vector<8x1xf32>
      %144 = vector.broadcast %136 : vector<8x1xf32> to vector<8x32xf32>
      %145 = arith.subf %132, %144 : vector<8x32xf32>
      %cst_58 = arith.constant 9.99999974E-6 : f32
      %146 = vector.broadcast %cst_58 : f32 to vector<8x1xf32>
      %147 = arith.addf %143, %146 : vector<8x1xf32>
      %148 = math.rsqrt %147 : vector<8x1xf32>
      %149 = vector.broadcast %148 : vector<8x1xf32> to vector<8x32xf32>
      %150 = arith.mulf %145, %149 : vector<8x32xf32>
      %151 = vector.shape_cast %1 : vector<32xf32> to vector<1x32xf32>
      %152 = vector.broadcast %151 : vector<1x32xf32> to vector<8x32xf32>
      %153 = arith.mulf %150, %152 : vector<8x32xf32>
      %154 = vector.shape_cast %3 : vector<32xf32> to vector<1x32xf32>
      %155 = vector.broadcast %154 : vector<1x32xf32> to vector<8x32xf32>
      %156 = arith.addf %153, %155 : vector<8x32xf32>
      %157 = arith.truncf %156 : vector<8x32xf32> to vector<8x32xbf16>
      %c0_59 = arith.constant 0 : index
      %c0_60 = arith.constant 0 : index
      %158 = vector.load %arg5[%c0_59, %c0_60] : memref<32x96xbf16, #tpu.memory_space<vmem>>, vector<32x96xbf16>
      %cst_61 = arith.constant dense<0.000000e+00> : vector<8x96xf32>
      %159 = tpu.matmul %157, %158, %cst_61 {dimension_numbers = #tpu.dot_dimension_numbers<[1], [0], [0], [1], [0, 0, 1, 1], [], []>} : vector<8x32xbf16>, vector<32x96xbf16>, vector<8x96xf32> -> vector<8x96xf32>
      %c0_62 = arith.constant 0 : index
      %c0_63 = arith.constant 0 : index
      %160 = vector.load %arg6[%c0_62, %c0_63] : memref<1x96xf32, #tpu.memory_space<vmem>>, vector<1x96xf32>
      %161 = vector.shape_cast %160 : vector<1x96xf32> to vector<96xf32>
      %162 = vector.shape_cast %161 : vector<96xf32> to vector<1x96xf32>
      %163 = vector.broadcast %162 : vector<1x96xf32> to vector<8x96xf32>
      %164 = arith.addf %159, %163 : vector<8x96xf32>
      %165 = vector.extract_strided_slice %164 {offsets = [0, 0], sizes = [8, 8], strides = [1, 1]} : vector<8x96xf32> to vector<8x8xf32>
      %cst_64 = arith.constant 0.176776692 : f32
      %166 = vector.broadcast %cst_64 : f32 to vector<8x8xf32>
      %167 = arith.mulf %165, %166 : vector<8x8xf32>
      %168 = arith.truncf %167 : vector<8x8xf32> to vector<8x8xbf16>
      %c0_65 = arith.constant 0 : index
      %c0_66 = arith.constant 0 : index
      %c0_67 = arith.constant 0 : index
      %169 = vector.load %arg16[%c0_65, %c0_66, %c0_67] : memref<4x8x8xbf16, #tpu.memory_space<vmem>>, vector<1x8x8xbf16>
      %170 = vector.shape_cast %169 : vector<1x8x8xbf16> to vector<8x8xbf16>
      %171 = vector.shape_cast %168 : vector<8x8xbf16> to vector<1x8x8xbf16>
      tpu.vector_store %arg16[%c0_65, %c0_66, %c0_67], %171 {strides = array<i32>} : memref<4x8x8xbf16, #tpu.memory_space<vmem>>, vector<1x8x8xbf16>,
      %172 = vector.extract_strided_slice %164 {offsets = [0, 32], sizes = [8, 8], strides = [1, 1]} : vector<8x96xf32> to vector<8x8xf32>
      %173 = arith.truncf %172 : vector<8x8xf32> to vector<8x8xbf16>
      %c0_68 = arith.constant 0 : index
      %c0_69 = arith.constant 0 : index
      %c0_70 = arith.constant 0 : index
      %174 = vector.load %arg17[%c0_68, %c0_69, %c0_70] : memref<4x8x8xbf16, #tpu.memory_space<vmem>>, vector<1x8x8xbf16>
      %175 = vector.shape_cast %174 : vector<1x8x8xbf16> to vector<8x8xbf16>
      %176 = vector.shape_cast %173 : vector<8x8xbf16> to vector<1x8x8xbf16>
      tpu.vector_store %arg17[%c0_68, %c0_69, %c0_70], %176 {strides = array<i32>} : memref<4x8x8xbf16, #tpu.memory_space<vmem>>, vector<1x8x8xbf16>,
      %177 = vector.extract_strided_slice %164 {offsets = [0, 64], sizes = [8, 8], strides = [1, 1]} : vector<8x96xf32> to vector<8x8xf32>
      %178 = arith.truncf %177 : vector<8x8xf32> to vector<8x8xbf16>
      %c0_71 = arith.constant 0 : index
      %c0_72 = arith.constant 0 : index
      %c0_73 = arith.constant 0 : index
      %179 = vector.load %arg18[%c0_71, %c0_72, %c0_73] : memref<4x8x8xbf16, #tpu.memory_space<vmem>>, vector<1x8x8xbf16>
      %180 = vector.shape_cast %179 : vector<1x8x8xbf16> to vector<8x8xbf16>
      %181 = vector.shape_cast %178 : vector<8x8xbf16> to vector<1x8x8xbf16>
      tpu.vector_store %arg18[%c0_71, %c0_72, %c0_73], %181 {strides = array<i32>} : memref<4x8x8xbf16, #tpu.memory_space<vmem>>, vector<1x8x8xbf16>,
      %182 = vector.extract_strided_slice %164 {offsets = [0, 8], sizes = [8, 8], strides = [1, 1]} : vector<8x96xf32> to vector<8x8xf32>
      %cst_74 = arith.constant 0.176776692 : f32
      %183 = vector.broadcast %cst_74 : f32 to vector<8x8xf32>
      %184 = arith.mulf %182, %183 : vector<8x8xf32>
      %185 = arith.truncf %184 : vector<8x8xf32> to vector<8x8xbf16>
      %c1 = arith.constant 1 : index
      %c0_75 = arith.constant 0 : index
      %c0_76 = arith.constant 0 : index
      %186 = vector.load %arg16[%c1, %c0_75, %c0_76] : memref<4x8x8xbf16, #tpu.memory_space<vmem>>, vector<1x8x8xbf16>
      %187 = vector.shape_cast %186 : vector<1x8x8xbf16> to vector<8x8xbf16>
      %188 = vector.shape_cast %185 : vector<8x8xbf16> to vector<1x8x8xbf16>
      tpu.vector_store %arg16[%c1, %c0_75, %c0_76], %188 {strides = array<i32>} : memref<4x8x8xbf16, #tpu.memory_space<vmem>>, vector<1x8x8xbf16>,
      %189 = vector.extract_strided_slice %164 {offsets = [0, 40], sizes = [8, 8], strides = [1, 1]} : vector<8x96xf32> to vector<8x8xf32>
      %190 = arith.truncf %189 : vector<8x8xf32> to vector<8x8xbf16>
      %c1_77 = arith.constant 1 : index
      %c0_78 = arith.constant 0 : index
      %c0_79 = arith.constant 0 : index
      %191 = vector.load %arg17[%c1_77, %c0_78, %c0_79] : memref<4x8x8xbf16, #tpu.memory_space<vmem>>, vector<1x8x8xbf16>
      %192 = vector.shape_cast %191 : vector<1x8x8xbf16> to vector<8x8xbf16>
      %193 = vector.shape_cast %190 : vector<8x8xbf16> to vector<1x8x8xbf16>
      tpu.vector_store %arg17[%c1_77, %c0_78, %c0_79], %193 {strides = array<i32>} : memref<4x8x8xbf16, #tpu.memory_space<vmem>>, vector<1x8x8xbf16>,
      %194 = vector.extract_strided_slice %164 {offsets = [0, 72], sizes = [8, 8], strides = [1, 1]} : vector<8x96xf32> to vector<8x8xf32>
      %195 = arith.truncf %194 : vector<8x8xf32> to vector<8x8xbf16>
      %c1_80 = arith.constant 1 : index
      %c0_81 = arith.constant 0 : index
      %c0_82 = arith.constant 0 : index
      %196 = vector.load %arg18[%c1_80, %c0_81, %c0_82] : memref<4x8x8xbf16, #tpu.memory_space<vmem>>, vector<1x8x8xbf16>
      %197 = vector.shape_cast %196 : vector<1x8x8xbf16> to vector<8x8xbf16>
      %198 = vector.shape_cast %195 : vector<8x8xbf16> to vector<1x8x8xbf16>
      tpu.vector_store %arg18[%c1_80, %c0_81, %c0_82], %198 {strides = array<i32>} : memref<4x8x8xbf16, #tpu.memory_space<vmem>>, vector<1x8x8xbf16>,
      %199 = vector.extract_strided_slice %164 {offsets = [0, 16], sizes = [8, 8], strides = [1, 1]} : vector<8x96xf32> to vector<8x8xf32>
      %cst_83 = arith.constant 0.176776692 : f32
      %200 = vector.broadcast %cst_83 : f32 to vector<8x8xf32>
      %201 = arith.mulf %199, %200 : vector<8x8xf32>
      %202 = arith.truncf %201 : vector<8x8xf32> to vector<8x8xbf16>
      %c2 = arith.constant 2 : index
      %c0_84 = arith.constant 0 : index
      %c0_85 = arith.constant 0 : index
      %203 = vector.load %arg16[%c2, %c0_84, %c0_85] : memref<4x8x8xbf16, #tpu.memory_space<vmem>>, vector<1x8x8xbf16>
      %204 = vector.shape_cast %203 : vector<1x8x8xbf16> to vector<8x8xbf16>
      %205 = vector.shape_cast %202 : vector<8x8xbf16> to vector<1x8x8xbf16>
      tpu.vector_store %arg16[%c2, %c0_84, %c0_85], %205 {strides = array<i32>} : memref<4x8x8xbf16, #tpu.memory_space<vmem>>, vector<1x8x8xbf16>,
      %206 = vector.extract_strided_slice %164 {offsets = [0, 48], sizes = [8, 8], strides = [1, 1]} : vector<8x96xf32> to vector<8x8xf32>
      %207 = arith.truncf %206 : vector<8x8xf32> to vector<8x8xbf16>
      %c2_86 = arith.constant 2 : index
      %c0_87 = arith.constant 0 : index
      %c0_88 = arith.constant 0 : index
      %208 = vector.load %arg17[%c2_86, %c0_87, %c0_88] : memref<4x8x8xbf16, #tpu.memory_space<vmem>>, vector<1x8x8xbf16>
      %209 = vector.shape_cast %208 : vector<1x8x8xbf16> to vector<8x8xbf16>
      %210 = vector.shape_cast %207 : vector<8x8xbf16> to vector<1x8x8xbf16>
      tpu.vector_store %arg17[%c2_86, %c0_87, %c0_88], %210 {strides = array<i32>} : memref<4x8x8xbf16, #tpu.memory_space<vmem>>, vector<1x8x8xbf16>,
      %211 = vector.extract_strided_slice %164 {offsets = [0, 80], sizes = [8, 8], strides = [1, 1]} : vector<8x96xf32> to vector<8x8xf32>
      %212 = arith.truncf %211 : vector<8x8xf32> to vector<8x8xbf16>
      %c2_89 = arith.constant 2 : index
      %c0_90 = arith.constant 0 : index
      %c0_91 = arith.constant 0 : index
      %213 = vector.load %arg18[%c2_89, %c0_90, %c0_91] : memref<4x8x8xbf16, #tpu.memory_space<vmem>>, vector<1x8x8xbf16>
      %214 = vector.shape_cast %213 : vector<1x8x8xbf16> to vector<8x8xbf16>
      %215 = vector.shape_cast %212 : vector<8x8xbf16> to vector<1x8x8xbf16>
      tpu.vector_store %arg18[%c2_89, %c0_90, %c0_91], %215 {strides = array<i32>} : memref<4x8x8xbf16, #tpu.memory_space<vmem>>, vector<1x8x8xbf16>,
      %216 = vector.extract_strided_slice %164 {offsets = [0, 24], sizes = [8, 8], strides = [1, 1]} : vector<8x96xf32> to vector<8x8xf32>
      %cst_92 = arith.constant 0.176776692 : f32
      %217 = vector.broadcast %cst_92 : f32 to vector<8x8xf32>
      %218 = arith.mulf %216, %217 : vector<8x8xf32>
      %219 = arith.truncf %218 : vector<8x8xf32> to vector<8x8xbf16>
      %c3 = arith.constant 3 : index
      %c0_93 = arith.constant 0 : index
      %c0_94 = arith.constant 0 : index
      %220 = vector.load %arg16[%c3, %c0_93, %c0_94] : memref<4x8x8xbf16, #tpu.memory_space<vmem>>, vector<1x8x8xbf16>
      %221 = vector.shape_cast %220 : vector<1x8x8xbf16> to vector<8x8xbf16>
      %222 = vector.shape_cast %219 : vector<8x8xbf16> to vector<1x8x8xbf16>
      tpu.vector_store %arg16[%c3, %c0_93, %c0_94], %222 {strides = array<i32>} : memref<4x8x8xbf16, #tpu.memory_space<vmem>>, vector<1x8x8xbf16>,
      %223 = vector.extract_strided_slice %164 {offsets = [0, 56], sizes = [8, 8], strides = [1, 1]} : vector<8x96xf32> to vector<8x8xf32>
      %224 = arith.truncf %223 : vector<8x8xf32> to vector<8x8xbf16>
      %c3_95 = arith.constant 3 : index
      %c0_96 = arith.constant 0 : index
      %c0_97 = arith.constant 0 : index
      %225 = vector.load %arg17[%c3_95, %c0_96, %c0_97] : memref<4x8x8xbf16, #tpu.memory_space<vmem>>, vector<1x8x8xbf16>
      %226 = vector.shape_cast %225 : vector<1x8x8xbf16> to vector<8x8xbf16>
      %227 = vector.shape_cast %224 : vector<8x8xbf16> to vector<1x8x8xbf16>
      tpu.vector_store %arg17[%c3_95, %c0_96, %c0_97], %227 {strides = array<i32>} : memref<4x8x8xbf16, #tpu.memory_space<vmem>>, vector<1x8x8xbf16>,
      %228 = vector.extract_strided_slice %164 {offsets = [0, 88], sizes = [8, 8], strides = [1, 1]} : vector<8x96xf32> to vector<8x8xf32>
      %229 = arith.truncf %228 : vector<8x8xf32> to vector<8x8xbf16>
      %c3_98 = arith.constant 3 : index
      %c0_99 = arith.constant 0 : index
      %c0_100 = arith.constant 0 : index
      %230 = vector.load %arg18[%c3_98, %c0_99, %c0_100] : memref<4x8x8xbf16, #tpu.memory_space<vmem>>, vector<1x8x8xbf16>
      %231 = vector.shape_cast %230 : vector<1x8x8xbf16> to vector<8x8xbf16>
      %232 = vector.shape_cast %229 : vector<8x8xbf16> to vector<1x8x8xbf16>
      tpu.vector_store %arg18[%c3_98, %c0_99, %c0_100], %232 {strides = array<i32>} : memref<4x8x8xbf16, #tpu.memory_space<vmem>>, vector<1x8x8xbf16>,
    } else {
    }
    %c8_i32 = arith.constant 8 : i32
    %7 = arith.muli %arg1, %c8_i32 : i32
    %8 = tpu.assume_multiple %7, 8 : i32
    %c0_4 = arith.constant 0 : index
    %9 = arith.index_cast %8 : i32 to index
    %c0_5 = arith.constant 0 : index
    %10 = vector.load %arg2[%c0_4, %9, %c0_5] : memref<1x8x32xf32, #tpu.memory_space<vmem>>, vector<1x8x32xf32>
    %11 = vector.shape_cast %10 : vector<1x8x32xf32> to vector<8x32xf32>
    %cst = arith.constant dense<0.000000e+00> : vector<8xf32>
    %12 = vector.multi_reduction <add>, %11, %cst [1] : vector<8x32xf32> to vector<8xf32>
    %13 = vector.shape_cast %12 : vector<8xf32> to vector<8x1xf32>
    %cst_6 = arith.constant 3.200000e+01 : f32
    %14 = vector.broadcast %cst_6 : f32 to vector<8x1xf32>
    %15 = arith.divf %13, %14 : vector<8x1xf32>
    %16 = vector.broadcast %15 : vector<8x1xf32> to vector<8x32xf32>
    %17 = arith.subf %11, %16 : vector<8x32xf32>
    %18 = arith.mulf %17, %17 : vector<8x32xf32>
    %cst_7 = arith.constant dense<0.000000e+00> : vector<8xf32>
    %19 = vector.multi_reduction <add>, %18, %cst_7 [1] : vector<8x32xf32> to vector<8xf32>
    %20 = vector.shape_cast %19 : vector<8xf32> to vector<8x1xf32>
    %cst_8 = arith.constant 3.200000e+01 : f32
    %21 = vector.broadcast %cst_8 : f32 to vector<8x1xf32>
    %22 = arith.divf %20, %21 : vector<8x1xf32>
    %23 = vector.broadcast %15 : vector<8x1xf32> to vector<8x32xf32>
    %24 = arith.subf %11, %23 : vector<8x32xf32>
    %cst_9 = arith.constant 9.99999974E-6 : f32
    %25 = vector.broadcast %cst_9 : f32 to vector<8x1xf32>
    %26 = arith.addf %22, %25 : vector<8x1xf32>
    %27 = math.rsqrt %26 : vector<8x1xf32>
    %28 = vector.broadcast %27 : vector<8x1xf32> to vector<8x32xf32>
    %29 = arith.mulf %24, %28 : vector<8x32xf32>
    %30 = vector.shape_cast %1 : vector<32xf32> to vector<1x32xf32>
    %31 = vector.broadcast %30 : vector<1x32xf32> to vector<8x32xf32>
    %32 = arith.mulf %29, %31 : vector<8x32xf32>
    %33 = vector.shape_cast %3 : vector<32xf32> to vector<1x32xf32>
    %34 = vector.broadcast %33 : vector<1x32xf32> to vector<8x32xf32>
    %35 = arith.addf %32, %34 : vector<8x32xf32>
    %c0_10 = arith.constant 0 : index
    %36 = arith.index_cast %8 : i32 to index
    %c0_11 = arith.constant 0 : index
    %37 = vector.load %arg16[%c0_10, %36, %c0_11] : memref<4x8x8xbf16, #tpu.memory_space<vmem>>, vector<4x8x8xbf16>
    %c0_12 = arith.constant 0 : index
    %c0_13 = arith.constant 0 : index
    %c0_14 = arith.constant 0 : index
    %38 = vector.load %arg17[%c0_12, %c0_13, %c0_14] : memref<4x8x8xbf16, #tpu.memory_space<vmem>>, vector<4x8x8xbf16>
    %c0_15 = arith.constant 0 : index
    %c0_16 = arith.constant 0 : index
    %c0_17 = arith.constant 0 : index
    %39 = vector.load %arg18[%c0_15, %c0_16, %c0_17] : memref<4x8x8xbf16, #tpu.memory_space<vmem>>, vector<4x8x8xbf16>
    "tpu.trace_start"() <{level = 10 : i32, message = "hqd,hkd->hqk"}> : () -> ()
    %cst_18 = arith.constant dense<0.000000e+00> : vector<4x8x8xf32>
    %40 = tpu.matmul %37, %38, %cst_18 {dimension_numbers = #tpu.dot_dimension_numbers<[2], [2], [1], [1], [0, 0, 0, 1, 1, 1], [0], [0]>} : vector<4x8x8xbf16>, vector<4x8x8xbf16>, vector<4x8x8xf32> -> vector<4x8x8xf32>
    "tpu.trace_stop"() : () -> ()
    %41 = tpu.iota {dimensions = array<i32: 0>} : vector<8x8xi32>
    %42 = vector.broadcast %8 : i32 to vector<8x8xi32>
    %43 = arith.addi %42, %41 : vector<8x8xi32>
    %44 = tpu.iota {dimensions = array<i32: 1>} : vector<8x8xi32>
    %45 = arith.cmpi sle, %44, %43 : vector<8x8xi32>
    %46 = vector.shape_cast %45 : vector<8x8xi1> to vector<1x8x8xi1>
    %cst_19 = arith.constant -1.000000e+30 : f32
    %47 = vector.shape_cast %46 : vector<1x8x8xi1> to vector<1x8x8xi1>
    %48 = vector.broadcast %47 : vector<1x8x8xi1> to vector<4x8x8xi1>
    %49 = vector.broadcast %cst_19 : f32 to vector<4x8x8xf32>
    %50 = arith.select %48, %40, %49 : vector<4x8x8xi1>, vector<4x8x8xf32>
    %cst_20 = arith.constant dense<0xFF800000> : vector<4x8xf32>
    %51 = vector.multi_reduction <maximumf>, %50, %cst_20 [2] : vector<4x8x8xf32> to vector<4x8xf32>
    %52 = vector.shape_cast %51 : vector<4x8xf32> to vector<4x8x1xf32>
    %53 = vector.broadcast %52 : vector<4x8x1xf32> to vector<4x8x8xf32>
    %54 = arith.subf %50, %53 : vector<4x8x8xf32>
    %55 = math.exp %54 : vector<4x8x8xf32>
    %cst_21 = arith.constant dense<0.000000e+00> : vector<4x8xf32>
    %56 = vector.multi_reduction <add>, %55, %cst_21 [2] : vector<4x8x8xf32> to vector<4x8xf32>
    %57 = vector.shape_cast %56 : vector<4x8xf32> to vector<4x8x1xf32>
    %58 = tpu.reciprocal %57 {approx = true} : vector<4x8x1xf32> -> vector<4x8x1xf32>
    %59 = vector.broadcast %58 : vector<4x8x1xf32> to vector<4x8x8xf32>
    %60 = arith.mulf %55, %59 : vector<4x8x8xf32>
    %61 = arith.truncf %60 : vector<4x8x8xf32> to vector<4x8x8xbf16>
    "tpu.trace_start"() <{level = 10 : i32, message = "hqk,hkd->hqd"}> : () -> ()
    %cst_22 = arith.constant dense<0.000000e+00> : vector<4x8x8xf32>
    %62 = tpu.matmul %61, %39, %cst_22 {dimension_numbers = #tpu.dot_dimension_numbers<[2], [1], [1], [2], [0, 0, 0, 1, 1, 2], [0], [0]>} : vector<4x8x8xbf16>, vector<4x8x8xbf16>, vector<4x8x8xf32> -> vector<4x8x8xf32>
    "tpu.trace_stop"() : () -> ()
    %63 = vector.extract_strided_slice %62 {offsets = [0, 0, 0], sizes = [1, 8, 8], strides = [1, 1, 1]} : vector<4x8x8xf32> to vector<1x8x8xf32>
    %64 = vector.shape_cast %63 : vector<1x8x8xf32> to vector<8x8xf32>
    %65 = vector.extract_strided_slice %62 {offsets = [1, 0, 0], sizes = [1, 8, 8], strides = [1, 1, 1]} : vector<4x8x8xf32> to vector<1x8x8xf32>
    %66 = vector.shape_cast %65 : vector<1x8x8xf32> to vector<8x8xf32>
    %67 = vector.extract_strided_slice %62 {offsets = [2, 0, 0], sizes = [1, 8, 8], strides = [1, 1, 1]} : vector<4x8x8xf32> to vector<1x8x8xf32>
    %68 = vector.shape_cast %67 : vector<1x8x8xf32> to vector<8x8xf32>
    %69 = vector.extract_strided_slice %62 {offsets = [3, 0, 0], sizes = [1, 8, 8], strides = [1, 1, 1]} : vector<4x8x8xf32> to vector<1x8x8xf32>
    %70 = vector.shape_cast %69 : vector<1x8x8xf32> to vector<8x8xf32>
    %71 = tpu.concatenate %64, %66, %68, %70 in 1 : vector<8x8xf32>, vector<8x8xf32>, vector<8x8xf32>, vector<8x8xf32> -> vector<8x32xf32>
    %72 = arith.truncf %71 : vector<8x32xf32> to vector<8x32xbf16>
    %c0_23 = arith.constant 0 : index
    %c0_24 = arith.constant 0 : index
    %73 = vector.load %arg7[%c0_23, %c0_24] : memref<32x32xbf16, #tpu.memory_space<vmem>>, vector<32x32xbf16>
    %cst_25 = arith.constant dense<0.000000e+00> : vector<8x32xf32>
    %74 = tpu.matmul %72, %73, %cst_25 {dimension_numbers = #tpu.dot_dimension_numbers<[1], [0], [0], [1], [0, 0, 1, 1], [], []>} : vector<8x32xbf16>, vector<32x32xbf16>, vector<8x32xf32> -> vector<8x32xf32>
    %c0_26 = arith.constant 0 : index
    %c0_27 = arith.constant 0 : index
    %75 = vector.load %arg8[%c0_26, %c0_27] : memref<1x32xf32, #tpu.memory_space<vmem>>, vector<1x32xf32>
    %76 = vector.shape_cast %75 : vector<1x32xf32> to vector<32xf32>
    %77 = vector.shape_cast %76 : vector<32xf32> to vector<1x32xf32>
    %78 = vector.broadcast %77 : vector<1x32xf32> to vector<8x32xf32>
    %79 = arith.addf %74, %78 : vector<8x32xf32>
    %80 = arith.addf %35, %79 : vector<8x32xf32>
    %c0_28 = arith.constant 0 : index
    %c0_29 = arith.constant 0 : index
    %81 = vector.load %arg9[%c0_28, %c0_29] : memref<1x32xf32, #tpu.memory_space<vmem>>, vector<1x32xf32>
    %82 = vector.shape_cast %81 : vector<1x32xf32> to vector<32xf32>
    %c0_30 = arith.constant 0 : index
    %c0_31 = arith.constant 0 : index
    %83 = vector.load %arg10[%c0_30, %c0_31] : memref<1x32xf32, #tpu.memory_space<vmem>>, vector<1x32xf32>
    %84 = vector.shape_cast %83 : vector<1x32xf32> to vector<32xf32>
    %cst_32 = arith.constant dense<0.000000e+00> : vector<8xf32>
    %85 = vector.multi_reduction <add>, %80, %cst_32 [1] : vector<8x32xf32> to vector<8xf32>
    %86 = vector.shape_cast %85 : vector<8xf32> to vector<8x1xf32>
    %cst_33 = arith.constant 3.200000e+01 : f32
    %87 = vector.broadcast %cst_33 : f32 to vector<8x1xf32>
    %88 = arith.divf %86, %87 : vector<8x1xf32>
    %89 = vector.broadcast %88 : vector<8x1xf32> to vector<8x32xf32>
    %90 = arith.subf %80, %89 : vector<8x32xf32>
    %91 = arith.mulf %90, %90 : vector<8x32xf32>
    %cst_34 = arith.constant dense<0.000000e+00> : vector<8xf32>
    %92 = vector.multi_reduction <add>, %91, %cst_34 [1] : vector<8x32xf32> to vector<8xf32>
    %93 = vector.shape_cast %92 : vector<8xf32> to vector<8x1xf32>
    %cst_35 = arith.constant 3.200000e+01 : f32
    %94 = vector.broadcast %cst_35 : f32 to vector<8x1xf32>
    %95 = arith.divf %93, %94 : vector<8x1xf32>
    %96 = vector.broadcast %88 : vector<8x1xf32> to vector<8x32xf32>
    %97 = arith.subf %80, %96 : vector<8x32xf32>
    %cst_36 = arith.constant 9.99999974E-6 : f32
    %98 = vector.broadcast %cst_36 : f32 to vector<8x1xf32>
    %99 = arith.addf %95, %98 : vector<8x1xf32>
    %100 = math.rsqrt %99 : vector<8x1xf32>
    %101 = vector.broadcast %100 : vector<8x1xf32> to vector<8x32xf32>
    %102 = arith.mulf %97, %101 : vector<8x32xf32>
    %103 = vector.shape_cast %82 : vector<32xf32> to vector<1x32xf32>
    %104 = vector.broadcast %103 : vector<1x32xf32> to vector<8x32xf32>
    %105 = arith.mulf %102, %104 : vector<8x32xf32>
    %106 = vector.shape_cast %84 : vector<32xf32> to vector<1x32xf32>
    %107 = vector.broadcast %106 : vector<1x32xf32> to vector<8x32xf32>
    %108 = arith.addf %105, %107 : vector<8x32xf32>
    %109 = arith.truncf %108 : vector<8x32xf32> to vector<8x32xbf16>
    %c0_37 = arith.constant 0 : index
    %c0_38 = arith.constant 0 : index
    %110 = vector.load %arg11[%c0_37, %c0_38] : memref<32x128xbf16, #tpu.memory_space<vmem>>, vector<32x128xbf16>
    %cst_39 = arith.constant dense<0.000000e+00> : vector<8x128xf32>
    %111 = tpu.matmul %109, %110, %cst_39 {dimension_numbers = #tpu.dot_dimension_numbers<[1], [0], [0], [1], [0, 0, 1, 1], [], []>} : vector<8x32xbf16>, vector<32x128xbf16>, vector<8x128xf32> -> vector<8x128xf32>
    %c0_40 = arith.constant 0 : index
    %c0_41 = arith.constant 0 : index
    %112 = vector.load %arg12[%c0_40, %c0_41] : memref<1x128xf32, #tpu.memory_space<vmem>>, vector<1x128xf32>
    %113 = vector.shape_cast %112 : vector<1x128xf32> to vector<128xf32>
    %114 = vector.shape_cast %113 : vector<128xf32> to vector<1x128xf32>
    %115 = vector.broadcast %114 : vector<1x128xf32> to vector<8x128xf32>
    %116 = arith.addf %111, %115 : vector<8x128xf32>
    %cst_42 = arith.constant 0.000000e+00 : f32
    %117 = vector.broadcast %cst_42 : f32 to vector<8x128xf32>
    %118 = arith.maximumf %116, %117 : vector<8x128xf32>
    %119 = arith.truncf %118 : vector<8x128xf32> to vector<8x128xbf16>
    %c0_43 = arith.constant 0 : index
    %c0_44 = arith.constant 0 : index
    %120 = vector.load %arg13[%c0_43, %c0_44] : memref<128x32xbf16, #tpu.memory_space<vmem>>, vector<128x32xbf16>
    %cst_45 = arith.constant dense<0.000000e+00> : vector<8x32xf32>
    %121 = tpu.matmul %119, %120, %cst_45 {dimension_numbers = #tpu.dot_dimension_numbers<[1], [0], [0], [1], [0, 0, 1, 1], [], []>} : vector<8x128xbf16>, vector<128x32xbf16>, vector<8x32xf32> -> vector<8x32xf32>
    %c0_46 = arith.constant 0 : index
    %c0_47 = arith.constant 0 : index
    %122 = vector.load %arg14[%c0_46, %c0_47] : memref<1x32xf32, #tpu.memory_space<vmem>>, vector<1x32xf32>
    %123 = vector.shape_cast %122 : vector<1x32xf32> to vector<32xf32>
    %124 = vector.shape_cast %123 : vector<32xf32> to vector<1x32xf32>
    %125 = vector.broadcast %124 : vector<1x32xf32> to vector<8x32xf32>
    %126 = arith.addf %121, %125 : vector<8x32xf32>
    %127 = arith.addf %108, %126 : vector<8x32xf32>
    %c0_48 = arith.constant 0 : index
    %c0_49 = arith.constant 0 : index
    %c0_50 = arith.constant 0 : index
    %128 = vector.load %arg15[%c0_48, %c0_49, %c0_50] : memref<1x8x32xf32, #tpu.memory_space<vmem>>, vector<1x8x32xf32>
    %129 = vector.shape_cast %128 : vector<1x8x32xf32> to vector<8x32xf32>
    %130 = vector.shape_cast %127 : vector<8x32xf32> to vector<1x8x32xf32>
    tpu.vector_store %arg15[%c0_48, %c0_49, %c0_50], %130 {strides = array<i32>} : memref<1x8x32xf32, #tpu.memory_space<vmem>>, vector<1x8x32xf32>,
    return
  }
  func.func @transform_0(%arg0: i32, %arg1: i32) -> (i32, i32, i32) {
    %c0_i32 = arith.constant 0 : i32
    %c0_i32_0 = arith.constant 0 : i32
    %c0_i32_1 = arith.constant 0 : i32
    return %arg0, %c0_i32, %c0_i32_0 : i32, i32, i32
  }
  func.func @transform_1(%arg0: i32, %arg1: i32) -> (i32, i32) {
    %c0_i32 = arith.constant 0 : i32
    %c0_i32_0 = arith.constant 0 : i32
    %c0_i32_1 = arith.constant 0 : i32
    return %c0_i32, %c0_i32_0 : i32, i32
  }
  func.func @transform_2(%arg0: i32, %arg1: i32) -> (i32, i32) {
    %c0_i32 = arith.constant 0 : i32
    %c0_i32_0 = arith.constant 0 : i32
    %c0_i32_1 = arith.constant 0 : i32
    return %c0_i32, %c0_i32_0 : i32, i32
  }
  func.func @transform_3(%arg0: i32, %arg1: i32) -> (i32, i32) {
    %c0_i32 = arith.constant 0 : i32
    %c0_i32_0 = arith.constant 0 : i32
    %c0_i32_1 = arith.constant 0 : i32
    return %c0_i32, %c0_i32_0 : i32, i32
  }
  func.func @transform_4(%arg0: i32, %arg1: i32) -> (i32, i32) {
    %c0_i32 = arith.constant 0 : i32
    %c0_i32_0 = arith.constant 0 : i32
    %c0_i32_1 = arith.constant 0 : i32
    return %c0_i32, %c0_i32_0 : i32, i32
  }
  func.func @transform_5(%arg0: i32, %arg1: i32) -> (i32, i32) {
    %c0_i32 = arith.constant 0 : i32
    %c0_i32_0 = arith.constant 0 : i32
    %c0_i32_1 = arith.constant 0 : i32
    return %c0_i32, %c0_i32_0 : i32, i32
  }
  func.func @transform_6(%arg0: i32, %arg1: i32) -> (i32, i32) {
    %c0_i32 = arith.constant 0 : i32
    %c0_i32_0 = arith.constant 0 : i32
    %c0_i32_1 = arith.constant 0 : i32
    return %c0_i32, %c0_i32_0 : i32, i32
  }
  func.func @transform_7(%arg0: i32, %arg1: i32) -> (i32, i32) {
    %c0_i32 = arith.constant 0 : i32
    %c0_i32_0 = arith.constant 0 : i32
    %c0_i32_1 = arith.constant 0 : i32
    return %c0_i32, %c0_i32_0 : i32, i32
  }
  func.func @transform_8(%arg0: i32, %arg1: i32) -> (i32, i32) {
    %c0_i32 = arith.constant 0 : i32
    %c0_i32_0 = arith.constant 0 : i32
    %c0_i32_1 = arith.constant 0 : i32
    return %c0_i32, %c0_i32_0 : i32, i32
  }
  func.func @transform_9(%arg0: i32, %arg1: i32) -> (i32, i32) {
    %c0_i32 = arith.constant 0 : i32
    %c0_i32_0 = arith.constant 0 : i32
    %c0_i32_1 = arith.constant 0 : i32
    return %c0_i32, %c0_i32_0 : i32, i32
  }
  func.func @transform_10(%arg0: i32, %arg1: i32) -> (i32, i32) {
    %c0_i32 = arith.constant 0 : i32
    %c0_i32_0 = arith.constant 0 : i32
    %c0_i32_1 = arith.constant 0 : i32
    return %c0_i32, %c0_i32_0 : i32, i32
  }
  func.func @transform_11(%arg0: i32, %arg1: i32) -> (i32, i32) {
    %c0_i32 = arith.constant 0 : i32
    %c0_i32_0 = arith.constant 0 : i32
    %c0_i32_1 = arith.constant 0 : i32
    return %c0_i32, %c0_i32_0 : i32, i32
  }
  func.func @transform_12(%arg0: i32, %arg1: i32) -> (i32, i32) {
    %c0_i32 = arith.constant 0 : i32
    %c0_i32_0 = arith.constant 0 : i32
    %c0_i32_1 = arith.constant 0 : i32
    return %c0_i32, %c0_i32_0 : i32, i32
  }
  func.func @transform_13(%arg0: i32, %arg1: i32) -> (i32, i32, i32) {
    %c0_i32 = arith.constant 0 : i32
    %c0_i32_0 = arith.constant 0 : i32
    return %arg0, %arg1, %c0_i32 : i32, i32, i32
  }
}

</mosaic_0001>

<llo_original>
// kernel: tpu_custom_call.1
$region0: #{tpu_custom_call.1}
  #allocation0 [shape = 'u32[]', space=smem, size = 0x4, offset = 0x4, fixed_abs, tag = 'smem constant byte address 0x4 - core index']
  #allocation1 [shape = 'u32[144,128]{1,0:T(1,128)}', space=vmem, size = 0x12000, scoped, tag = 'internal scratch']
  #allocation2 [shape = 'bf16[4,8,8]{2,1,0:T(8,128)(2,1)}', space=vmem, size = 0x2000, scoped, tag = 'scratch operand']
  #allocation3 [shape = 'bf16[4,8,8]{2,1,0:T(8,128)(2,1)}', space=vmem, size = 0x2000, scoped, tag = 'scratch operand']
  #allocation4 [shape = 'bf16[4,8,8]{2,1,0:T(8,128)(2,1)}', space=vmem, size = 0x2000, scoped, tag = 'scratch operand']
  %s0 = inlined_call_operand.vmem [shape: f32[2,8,32], index: 0, kind: input, shape index: {}]
  %s1 = inlined_call_operand.vmem [shape: f32[1,32], index: 1, kind: input, shape index: {}]
  %s2 = inlined_call_operand.vmem [shape: f32[1,32], index: 2, kind: input, shape index: {}]
  %s3 = inlined_call_operand.vmem [shape: bf16[32,96], index: 3, kind: input, shape index: {}]
  %s4 = inlined_call_operand.vmem [shape: f32[1,96], index: 4, kind: input, shape index: {}]
  %s5 = inlined_call_operand.vmem [shape: bf16[32,32], index: 5, kind: input, shape index: {}]
  %s6 = inlined_call_operand.vmem [shape: f32[1,32], index: 6, kind: input, shape index: {}]
  %s7 = inlined_call_operand.vmem [shape: f32[1,32], index: 7, kind: input, shape index: {}]
  %s8 = inlined_call_operand.vmem [shape: f32[1,32], index: 8, kind: input, shape index: {}]
  %s9 = inlined_call_operand.vmem [shape: bf16[32,128], index: 9, kind: input, shape index: {}]
  %s10 = inlined_call_operand.vmem [shape: f32[1,128], index: 10, kind: input, shape index: {}]
  %s11 = inlined_call_operand.vmem [shape: bf16[128,32], index: 11, kind: input, shape index: {}]
  %s12 = inlined_call_operand.vmem [shape: f32[1,32], index: 12, kind: input, shape index: {}]
  %s13 = inlined_call_operand.hbm [shape: f32[2,8,32], index: 13, kind: output, shape index: {}]
  %s14 = sld [smem:[#allocation0]]
  $region89: #{tpu_custom_call.1} parent=0
    _
  %s16 = ssub.s32 1, %s14
  %s17 = scalar_select 0, %s16, %s14
  $region1: #{tpu_custom_call.1} parent=0
    #allocation5 [shape = 'u8[8192]{0}', space=vmem, size = 0x2000, scoped, tag = 'output window, operand 0']
    #allocation6 [shape = 's32[2]{0}', space=sflag, size = 0x8, scoped, tag = 'scoped memory for tpu_custom_call.1']
    %18 = vsyncpa [#allocation6], 0
    %s19 = scalar_lea.sflag [#allocation6], 1
    %20 = vsyncpa %s19, 0
    loop: start=0, step=1, limit=4
    $region2: #{tpu_custom_call.1} parent=1 // loop_pre_header
      _
    $region3: #{tpu_custom_call.1} parent=1 // loop_header
      %s22 = sphi 0, %s26
      %p23 = scmp.ge.s32.totalorder %s22, 4
      %s29 = sphi 0, %s41
      %s30 = sphi 0, %s37
      %s31 = sphi 0, %s29
      %s32 = sphi 0, %s30
      %s33 = sphi 0, %s31
      %s34 = sphi 0, %s32
      %s44 = sphi 0, %s46
      %s47 = sphi 0, %s44
      %s48 = sphi 0, %s47
      %s64 = sphi 0, %s48
      %s68 = sphi 0, %s68
      %s70 = sphi 0, %s68
      %s71 = sphi 0, %s70
      %s85 = sphi 0, %s71
      %s89 = sphi 0, %s89
      %s91 = sphi 0, %s89
      %s92 = sphi 0, %s91
      %s106 = sphi 0, %s92
      %s110 = sphi 0, %s110
      %s112 = sphi 0, %s110
      %s113 = sphi 0, %s112
      %s127 = sphi 0, %s113
      %s131 = sphi 0, %s131
      %s133 = sphi 0, %s131
      %s134 = sphi 0, %s133
      %s148 = sphi 0, %s134
      %s152 = sphi 0, %s152
      %s154 = sphi 0, %s152
      %s155 = sphi 0, %s154
      %s169 = sphi 0, %s155
      %s173 = sphi 0, %s173
      %s175 = sphi 0, %s173
      %s176 = sphi 0, %s175
      %s190 = sphi 0, %s176
      %s194 = sphi 0, %s194
      %s196 = sphi 0, %s194
      %s197 = sphi 0, %s196
      %s211 = sphi 0, %s197
      %s215 = sphi 0, %s215
      %s217 = sphi 0, %s215
      %s218 = sphi 0, %s217
      %s232 = sphi 0, %s218
      %s236 = sphi 0, %s236
      %s238 = sphi 0, %s236
      %s239 = sphi 0, %s238
      %s253 = sphi 0, %s239
      %s257 = sphi 0, %s257
      %s259 = sphi 0, %s257
      %s260 = sphi 0, %s259
      %s274 = sphi 0, %s260
      %s278 = sphi 0, %s278
      %s280 = sphi 0, %s278
      %s281 = sphi 0, %s280
      %s295 = sphi 0, %s281
      %s299 = sphi 0, %s299
      %s301 = sphi 0, %s299
      %s302 = sphi 0, %s301
      %s316 = sphi 0, %s302
      %s324 = sphi 0, %s326
      %s327 = sphi 0, %s324
      %s328 = sphi 0, %s327
      %s344 = sphi 0, %s328
    $region4: #{tpu_custom_call.1} parent=1 // loop_header_branch
      %25 = sbr.rel (%p23) target = $region8
    $region5: #{tpu_custom_call.1} parent=1 // loop_body
      %s27 = ssub.s32 %s22, 1
      %s28 = ssub.s32 %s22, 2
      %s35 = sadd.s32 1, %s30
      %p36 = scmp.ge.s32.totalorder %s35, 1
      %s37 = scalar_select %p36, 0, %s35
      %s38 = sadd.s32 1, %s29
      %s39 = scalar_select %p36, %s38, %s29
      %p40 = scmp.ge.s32.totalorder %s39, 2
      %s41 = scalar_select %p40, 0, %s39
      %s42 = ssub.s32 %s29, %s41
      %p43 = scmp.eq.s32.totalorder %s42, 0
      %s45 = sadd.s32 %s44, 1
      %s46 = scalar_select %p43, %s44, %s45
      %p49 = pneg %p43
      %p50 = scmp.eq.s32.totalorder %s22, 1
      %p51 = por %p49, %p50
      %p52 = scmp.ne.s32.totalorder %s44, %s47
      %p53 = scmp.eq.s32.totalorder %s22, 0
      %p54 = por %p52, %p53
      %p55 = scmp.ne.s32.totalorder %s44, %s47
      %p56 = scmp.eq.s32.totalorder %s27, 1
      %p57 = por %p55, %p56
      %p58 = scmp.ne.s32.totalorder %s47, %s48
      %p59 = scmp.eq.s32.totalorder %s27, 0
      %p60 = por %p58, %p59
      %p61 = scmp.ne.s32.totalorder %s47, %s48
      %p62 = scmp.eq.s32.totalorder %s28, 1
      %p63 = por %p61, %p62
      %p65 = scmp.ne.s32.totalorder %s48, %s64
      %p66 = scmp.eq.s32.totalorder %s28, 0
      %p67 = por %p65, %p66
      %s69 = sadd.s32 %s68, 1
      %p72 = scmp.eq.s32.totalorder %s22, 1
      %p73 = scmp.ne.s32.totalorder %s68, %s70
      %p74 = scmp.eq.s32.totalorder %s22, 0
      %p75 = por %p73, %p74
      %p76 = scmp.ne.s32.totalorder %s68, %s70
      %p77 = scmp.eq.s32.totalorder %s27, 1
      %p78 = por %p76, %p77
      %p79 = scmp.ne.s32.totalorder %s70, %s71
      %p80 = scmp.eq.s32.totalorder %s27, 0
      %p81 = por %p79, %p80
      %p82 = scmp.ne.s32.totalorder %s70, %s71
      %p83 = scmp.eq.s32.totalorder %s28, 1
      %p84 = por %p82, %p83
      %p86 = scmp.ne.s32.totalorder %s71, %s85
      %p87 = scmp.eq.s32.totalorder %s28, 0
      %p88 = por %p86, %p87
      %s90 = sadd.s32 %s89, 1
      %p93 = scmp.eq.s32.totalorder %s22, 1
      %p94 = scmp.ne.s32.totalorder %s89, %s91
      %p95 = scmp.eq.s32.totalorder %s22, 0
      %p96 = por %p94, %p95
      %p97 = scmp.ne.s32.totalorder %s89, %s91
      %p98 = scmp.eq.s32.totalorder %s27, 1
      %p99 = por %p97, %p98
      %p100 = scmp.ne.s32.totalorder %s91, %s92
      %p101 = scmp.eq.s32.totalorder %s27, 0
      %p102 = por %p100, %p101
      %p103 = scmp.ne.s32.totalorder %s91, %s92
      %p104 = scmp.eq.s32.totalorder %s28, 1
      %p105 = por %p103, %p104
      %p107 = scmp.ne.s32.totalorder %s92, %s106
      %p108 = scmp.eq.s32.totalorder %s28, 0
      %p109 = por %p107, %p108
      %s111 = sadd.s32 %s110, 1
      %p114 = scmp.eq.s32.totalorder %s22, 1
      %p115 = scmp.ne.s32.totalorder %s110, %s112
      %p116 = scmp.eq.s32.totalorder %s22, 0
      %p117 = por %p115, %p116
      %p118 = scmp.ne.s32.totalorder %s110, %s112
      %p119 = scmp.eq.s32.totalorder %s27, 1
      %p120 = por %p118, %p119
      %p121 = scmp.ne.s32.totalorder %s112, %s113
      %p122 = scmp.eq.s32.totalorder %s27, 0
      %p123 = por %p121, %p122
      %p124 = scmp.ne.s32.totalorder %s112, %s113
      %p125 = scmp.eq.s32.totalorder %s28, 1
      %p126 = por %p124, %p125
      %p128 = scmp.ne.s32.totalorder %s113, %s127
      %p129 = scmp.eq.s32.totalorder %s28, 0
      %p130 = por %p128, %p129
      %s132 = sadd.s32 %s131, 1
      %p135 = scmp.eq.s32.totalorder %s22, 1
      %p136 = scmp.ne.s32.totalorder %s131, %s133
      %p137 = scmp.eq.s32.totalorder %s22, 0
      %p138 = por %p136, %p137
      %p139 = scmp.ne.s32.totalorder %s131, %s133
      %p140 = scmp.eq.s32.totalorder %s27, 1
      %p141 = por %p139, %p140
      %p142 = scmp.ne.s32.totalorder %s133, %s134
      %p143 = scmp.eq.s32.totalorder %s27, 0
      %p144 = por %p142, %p143
      %p145 = scmp.ne.s32.totalorder %s133, %s134
      %p146 = scmp.eq.s32.totalorder %s28, 1
      %p147 = por %p145, %p146
      %p149 = scmp.ne.s32.totalorder %s134, %s148
      %p150 = scmp.eq.s32.totalorder %s28, 0
      %p151 = por %p149, %p150
      %s153 = sadd.s32 %s152, 1
      %p156 = scmp.eq.s32.totalorder %s22, 1
      %p157 = scmp.ne.s32.totalorder %s152, %s154
      %p158 = scmp.eq.s32.totalorder %s22, 0
      %p159 = por %p157, %p158
      %p160 = scmp.ne.s32.totalorder %s152, %s154
      %p161 = scmp.eq.s32.totalorder %s27, 1
      %p162 = por %p160, %p161
      %p163 = scmp.ne.s32.totalorder %s154, %s155
      %p164 = scmp.eq.s32.totalorder %s27, 0
      %p165 = por %p163, %p164
      %p166 = scmp.ne.s32.totalorder %s154, %s155
      %p167 = scmp.eq.s32.totalorder %s28, 1
      %p168 = por %p166, %p167
      %p170 = scmp.ne.s32.totalorder %s155, %s169
      %p171 = scmp.eq.s32.totalorder %s28, 0
      %p172 = por %p170, %p171
      %s174 = sadd.s32 %s173, 1
      %p177 = scmp.eq.s32.totalorder %s22, 1
      %p178 = scmp.ne.s32.totalorder %s173, %s175
      %p179 = scmp.eq.s32.totalorder %s22, 0
      %p180 = por %p178, %p179
      %p181 = scmp.ne.s32.totalorder %s173, %s175
      %p182 = scmp.eq.s32.totalorder %s27, 1
      %p183 = por %p181, %p182
      %p184 = scmp.ne.s32.totalorder %s175, %s176
      %p185 = scmp.eq.s32.totalorder %s27, 0
      %p186 = por %p184, %p185
      %p187 = scmp.ne.s32.totalorder %s175, %s176
      %p188 = scmp.eq.s32.totalorder %s28, 1
      %p189 = por %p187, %p188
      %p191 = scmp.ne.s32.totalorder %s176, %s190
      %p192 = scmp.eq.s32.totalorder %s28, 0
      %p193 = por %p191, %p192
      %s195 = sadd.s32 %s194, 1
      %p198 = scmp.eq.s32.totalorder %s22, 1
      %p199 = scmp.ne.s32.totalorder %s194, %s196
      %p200 = scmp.eq.s32.totalorder %s22, 0
      %p201 = por %p199, %p200
      %p202 = scmp.ne.s32.totalorder %s194, %s196
      %p203 = scmp.eq.s32.totalorder %s27, 1
      %p204 = por %p202, %p203
      %p205 = scmp.ne.s32.totalorder %s196, %s197
      %p206 = scmp.eq.s32.totalorder %s27, 0
      %p207 = por %p205, %p206
      %p208 = scmp.ne.s32.totalorder %s196, %s197
      %p209 = scmp.eq.s32.totalorder %s28, 1
      %p210 = por %p208, %p209
      %p212 = scmp.ne.s32.totalorder %s197, %s211
      %p213 = scmp.eq.s32.totalorder %s28, 0
      %p214 = por %p212, %p213
      %s216 = sadd.s32 %s215, 1
      %p219 = scmp.eq.s32.totalorder %s22, 1
      %p220 = scmp.ne.s32.totalorder %s215, %s217
      %p221 = scmp.eq.s32.totalorder %s22, 0
      %p222 = por %p220, %p221
      %p223 = scmp.ne.s32.totalorder %s215, %s217
      %p224 = scmp.eq.s32.totalorder %s27, 1
      %p225 = por %p223, %p224
      %p226 = scmp.ne.s32.totalorder %s217, %s218
      %p227 = scmp.eq.s32.totalorder %s27, 0
      %p228 = por %p226, %p227
      %p229 = scmp.ne.s32.totalorder %s217, %s218
      %p230 = scmp.eq.s32.totalorder %s28, 1
      %p231 = por %p229, %p230
      %p233 = scmp.ne.s32.totalorder %s218, %s232
      %p234 = scmp.eq.s32.totalorder %s28, 0
      %p235 = por %p233, %p234
      %s237 = sadd.s32 %s236, 1
      %p240 = scmp.eq.s32.totalorder %s22, 1
      %p241 = scmp.ne.s32.totalorder %s236, %s238
      %p242 = scmp.eq.s32.totalorder %s22, 0
      %p243 = por %p241, %p242
      %p244 = scmp.ne.s32.totalorder %s236, %s238
      %p245 = scmp.eq.s32.totalorder %s27, 1
      %p246 = por %p244, %p245
      %p247 = scmp.ne.s32.totalorder %s238, %s239
      %p248 = scmp.eq.s32.totalorder %s27, 0
      %p249 = por %p247, %p248
      %p250 = scmp.ne.s32.totalorder %s238, %s239
      %p251 = scmp.eq.s32.totalorder %s28, 1
      %p252 = por %p250, %p251
      %p254 = scmp.ne.s32.totalorder %s239, %s253
      %p255 = scmp.eq.s32.totalorder %s28, 0
      %p256 = por %p254, %p255
      %s258 = sadd.s32 %s257, 1
      %p261 = scmp.eq.s32.totalorder %s22, 1
      %p262 = scmp.ne.s32.totalorder %s257, %s259
      %p263 = scmp.eq.s32.totalorder %s22, 0
      %p264 = por %p262, %p263
      %p265 = scmp.ne.s32.totalorder %s257, %s259
      %p266 = scmp.eq.s32.totalorder %s27, 1
      %p267 = por %p265, %p266
      %p268 = scmp.ne.s32.totalorder %s259, %s260
      %p269 = scmp.eq.s32.totalorder %s27, 0
      %p270 = por %p268, %p269
      %p271 = scmp.ne.s32.totalorder %s259, %s260
      %p272 = scmp.eq.s32.totalorder %s28, 1
      %p273 = por %p271, %p272
      %p275 = scmp.ne.s32.totalorder %s260, %s274
      %p276 = scmp.eq.s32.totalorder %s28, 0
      %p277 = por %p275, %p276
      %s279 = sadd.s32 %s278, 1
      %p282 = scmp.eq.s32.totalorder %s22, 1
      %p283 = scmp.ne.s32.totalorder %s278, %s280
      %p284 = scmp.eq.s32.totalorder %s22, 0
      %p285 = por %p283, %p284
      %p286 = scmp.ne.s32.totalorder %s278, %s280
      %p287 = scmp.eq.s32.totalorder %s27, 1
      %p288 = por %p286, %p287
      %p289 = scmp.ne.s32.totalorder %s280, %s281
      %p290 = scmp.eq.s32.totalorder %s27, 0
      %p291 = por %p289, %p290
      %p292 = scmp.ne.s32.totalorder %s280, %s281
      %p293 = scmp.eq.s32.totalorder %s28, 1
      %p294 = por %p292, %p293
      %p296 = scmp.ne.s32.totalorder %s281, %s295
      %p297 = scmp.eq.s32.totalorder %s28, 0
      %p298 = por %p296, %p297
      %s300 = sadd.s32 %s299, 1
      %p303 = scmp.eq.s32.totalorder %s22, 1
      %p304 = scmp.ne.s32.totalorder %s299, %s301
      %p305 = scmp.eq.s32.totalorder %s22, 0
      %p306 = por %p304, %p305
      %p307 = scmp.ne.s32.totalorder %s299, %s301
      %p308 = scmp.eq.s32.totalorder %s27, 1
      %p309 = por %p307, %p308
      %p310 = scmp.ne.s32.totalorder %s301, %s302
      %p311 = scmp.eq.s32.totalorder %s27, 0
      %p312 = por %p310, %p311
      %p313 = scmp.ne.s32.totalorder %s301, %s302
      %p314 = scmp.eq.s32.totalorder %s28, 1
      %p315 = por %p313, %p314
      %p317 = scmp.ne.s32.totalorder %s302, %s316
      %p318 = scmp.eq.s32.totalorder %s28, 0
      %p319 = por %p317, %p318
      %s320 = ssub.s32 %s29, %s41
      %s321 = ssub.s32 %s30, %s37
      %s322 = sor.u32 %s320, %s321
      %p323 = scmp.eq.s32.totalorder %s322, 0
      %s325 = sadd.s32 %s324, 1
      %s326 = scalar_select %p323, %s324, %s325
      %p329 = pneg %p323
      %p330 = scmp.eq.s32.totalorder %s22, 1
      %p331 = por %p329, %p330
      %p332 = scmp.ne.s32.totalorder %s324, %s327
      %p333 = scmp.eq.s32.totalorder %s22, 0
      %p334 = por %p332, %p333
      %p335 = scmp.ne.s32.totalorder %s324, %s327
      %p336 = scmp.eq.s32.totalorder %s27, 1
      %p337 = por %p335, %p336
      %p338 = scmp.ne.s32.totalorder %s327, %s328
      %p339 = scmp.eq.s32.totalorder %s27, 0
      %p340 = por %p338, %p339
      %p341 = scmp.ne.s32.totalorder %s327, %s328
      %p342 = scmp.eq.s32.totalorder %s28, 1
      %p343 = por %p341, %p342
      %p345 = scmp.ne.s32.totalorder %s328, %s344
      %p346 = scmp.eq.s32.totalorder %s28, 0
      %p347 = por %p345, %p346
      %p348 = scmp.le.s32.totalorder 1, %s22
      %p349 = scmp.lt.s32.totalorder %s22, 3
      %p350 = pnand %p348, %p349
      %p351 = pneg %p350
      // Predicated region
      $region9: #{tpu_custom_call.1} parent=5 // pred_check
        _
      $region10: #{tpu_custom_call.1} parent=5 // pred_check_branch
        %353 = sbr.rel (%p350) target = $region12
      $region11: #{tpu_custom_call.1} parent=5 // pred_region
        %s354 = ssub.s32 %s22, 1
        // Predicated region
        $region13: #{tpu_custom_call.1} parent=11 // pred_check
          %p355 = pneg %p81
        $region14: #{tpu_custom_call.1} parent=11 // pred_check_branch
          %357 = sbr.rel (%p355) target = $region16
        $region15: #{tpu_custom_call.1} parent=11 // pred_region
          _
        $region16: #{tpu_custom_call.1} parent=11 // pred_fallthru
          _
        // Predicated region
        $region17: #{tpu_custom_call.1} parent=11 // pred_check
          %p358 = pneg %p102
        $region18: #{tpu_custom_call.1} parent=11 // pred_check_branch
          %360 = sbr.rel (%p358) target = $region20
        $region19: #{tpu_custom_call.1} parent=11 // pred_region
          _
        $region20: #{tpu_custom_call.1} parent=11 // pred_fallthru
          _
        // Predicated region
        $region21: #{tpu_custom_call.1} parent=11 // pred_check
          %p361 = pneg %p123
        $region22: #{tpu_custom_call.1} parent=11 // pred_check_branch
          %363 = sbr.rel (%p361) target = $region24
        $region23: #{tpu_custom_call.1} parent=11 // pred_region
          _
        $region24: #{tpu_custom_call.1} parent=11 // pred_fallthru
          _
        // Predicated region
        $region25: #{tpu_custom_call.1} parent=11 // pred_check
          %p364 = pneg %p144
        $region26: #{tpu_custom_call.1} parent=11 // pred_check_branch
          %366 = sbr.rel (%p364) target = $region28
        $region27: #{tpu_custom_call.1} parent=11 // pred_region
          _
        $region28: #{tpu_custom_call.1} parent=11 // pred_fallthru
          _
        // Predicated region
        $region29: #{tpu_custom_call.1} parent=11 // pred_check
          %p367 = pneg %p165
        $region30: #{tpu_custom_call.1} parent=11 // pred_check_branch
          %369 = sbr.rel (%p367) target = $region32
        $region31: #{tpu_custom_call.1} parent=11 // pred_region
          _
        $region32: #{tpu_custom_call.1} parent=11 // pred_fallthru
          _
        // Predicated region
        $region33: #{tpu_custom_call.1} parent=11 // pred_check
          %p370 = pneg %p186
        $region34: #{tpu_custom_call.1} parent=11 // pred_check_branch
          %372 = sbr.rel (%p370) target = $region36
        $region35: #{tpu_custom_call.1} parent=11 // pred_region
          _
        $region36: #{tpu_custom_call.1} parent=11 // pred_fallthru
          _
        // Predicated region
        $region37: #{tpu_custom_call.1} parent=11 // pred_check
          %p373 = pneg %p207
        $region38: #{tpu_custom_call.1} parent=11 // pred_check_branch
          %375 = sbr.rel (%p373) target = $region40
        $region39: #{tpu_custom_call.1} parent=11 // pred_region
          _
        $region40: #{tpu_custom_call.1} parent=11 // pred_fallthru
          _
        // Predicated region
        $region41: #{tpu_custom_call.1} parent=11 // pred_check
          %p376 = pneg %p228
        $region42: #{tpu_custom_call.1} parent=11 // pred_check_branch
          %378 = sbr.rel (%p376) target = $region44
        $region43: #{tpu_custom_call.1} parent=11 // pred_region
          _
        $region44: #{tpu_custom_call.1} parent=11 // pred_fallthru
          _
        // Predicated region
        $region45: #{tpu_custom_call.1} parent=11 // pred_check
          %p379 = pneg %p249
        $region46: #{tpu_custom_call.1} parent=11 // pred_check_branch
          %381 = sbr.rel (%p379) target = $region48
        $region47: #{tpu_custom_call.1} parent=11 // pred_region
          _
        $region48: #{tpu_custom_call.1} parent=11 // pred_fallthru
          _
        // Predicated region
        $region49: #{tpu_custom_call.1} parent=11 // pred_check
          %p382 = pneg %p270
        $region50: #{tpu_custom_call.1} parent=11 // pred_check_branch
          %384 = sbr.rel (%p382) target = $region52
        $region51: #{tpu_custom_call.1} parent=11 // pred_region
          _
        $region52: #{tpu_custom_call.1} parent=11 // pred_fallthru
          _
        // Predicated region
        $region53: #{tpu_custom_call.1} parent=11 // pred_check
          %p385 = pneg %p291
        $region54: #{tpu_custom_call.1} parent=11 // pred_check_branch
          %387 = sbr.rel (%p385) target = $region56
        $region55: #{tpu_custom_call.1} parent=11 // pred_region
          _
        $region56: #{tpu_custom_call.1} parent=11 // pred_fallthru
          _
        // Predicated region
        $region57: #{tpu_custom_call.1} parent=11 // pred_check
          %p388 = pneg %p312
        $region58: #{tpu_custom_call.1} parent=11 // pred_check_branch
          %390 = sbr.rel (%p388) target = $region60
        $region59: #{tpu_custom_call.1} parent=11 // pred_region
          _
        $region60: #{tpu_custom_call.1} parent=11 // pred_fallthru
          _
      $region12: #{tpu_custom_call.1} parent=5 // pred_fallthru
        _
      %p391 = scmp.lt.s32.totalorder %s22, 2
      // Predicated region
      $region61: #{tpu_custom_call.1} parent=5 // pred_check
        %p392 = pneg %p391
      $region62: #{tpu_custom_call.1} parent=5 // pred_check_branch
        %394 = sbr.rel (%p392) target = $region64
      $region63: #{tpu_custom_call.1} parent=5 // pred_region
        // Predicated region
        $region65: #{tpu_custom_call.1} parent=63 // pred_check
          %p395 = pneg %p54
        $region66: #{tpu_custom_call.1} parent=63 // pred_check_branch
          %397 = sbr.rel (%p395) target = $region68
        $region67: #{tpu_custom_call.1} parent=63 // pred_region
          %p398 = scmp.lt.s32.totalorder %s29, 1
          %s399 = scalar_select %p398, %s29, 1
          %s400 = smul.addr %s399, 8
          %s401 = scalar_lea.vmem %s0, %s400
        $region68: #{tpu_custom_call.1} parent=63 // pred_fallthru
          _
      $region64: #{tpu_custom_call.1} parent=5 // pred_fallthru
        _
      %p402 = scmp.le.s32.totalorder 1, %s22
      %p403 = scmp.lt.s32.totalorder %s22, 3
      %p404 = pnand %p402, %p403
      %p405 = pneg %p404
      // Predicated region
      $region69: #{tpu_custom_call.1} parent=5 // pred_check
        _
      $region70: #{tpu_custom_call.1} parent=5 // pred_check_branch
        %407 = sbr.rel (%p404) target = $region72
      $region71: #{tpu_custom_call.1} parent=5 // pred_region
        %s408 = ssub.s32 %s22, 1
        %p409 = scmp.lt.s32.totalorder %s31, 1
        %s410 = scalar_select %p409, %s31, 1
        %s411 = smul.addr %s410, 8
        %s412 = scalar_lea.vmem %s0, %s411
        %p413 = pneg %p60
        %p414 = pneg %p57
        %p415 = pneg %p81
        %p416 = pneg %p78
        %p417 = pneg %p102
        %p418 = pneg %p99
        %p419 = pneg %p123
        %p420 = pneg %p120
        %p421 = pneg %p144
        %p422 = pneg %p141
        %p423 = pneg %p165
        %p424 = pneg %p162
        %p425 = pneg %p186
        %p426 = pneg %p183
        %p427 = pneg %p207
        %p428 = pneg %p204
        %p429 = pneg %p228
        %p430 = pneg %p225
        %p431 = pneg %p249
        %p432 = pneg %p246
        %p433 = pneg %p270
        %p434 = pneg %p267
        %p435 = pneg %p291
        %p436 = pneg %p288
        %p437 = pneg %p312
        %p438 = pneg %p309
        %p439 = pneg %p340
        %p440 = pneg %p337
        %s441 = sand.u32 %s327, 1
        %s442 = scalar_lea.sflag [#allocation6], %s441
        %s443 = sand.u32 %s327, 1
        %s444 = smul.addr %s443, 8
        %s445 = scalar_lea.vmem [#allocation5], %s444
        %p446 = scmp.lt.s32.totalorder %s31, 1
        %s447 = scalar_select %p446, %s31, 1
        %s448 = smul.addr %s447, 8
        %s449 = scalar_lea.vmem %s0, %s448
        %v451 = vld [vmem:[%s1] sm:$0x1]
        %v452 = vld [vmem:[%s2] sm:$0x1]
        %p453 = scmp.eq.s32.totalorder %s32, 0
        // Predicated region
        $region73: #{tpu_custom_call.1} parent=71 // pred_check
          %p454 = pneg %p453
        $region74: #{tpu_custom_call.1} parent=71 // pred_check_branch
          %456 = sbr.rel (%p454) target = $region76
        $region75: #{tpu_custom_call.1} parent=71 // pred_region
          %v457 = vld [vmem:[%s449] sm:$0xff]
          %vm458 = vcmask 261120
          %v459 = vsel %vm458, %v457, 0.0
          %460 = vadd.xlane.f32.xlu0 %v459
          %v461 = vpop.xlane.xlu0 %460
          %v462 = vrcp.pop 32.0
          %v463 = vmul.f32 %v461, %v462
          %v464 = vsub.f32 %v457, %v463
          %v465 = vmul.f32 %v464, %v464
          %v466 = vsel %vm458, %v465, 0.0
          %467 = vadd.xlane.f32.xlu0 %v466
          %v468 = vpop.xlane.xlu0 %467
          %v469 = vmul.f32 %v468, %v462
          %v470 = vadd.f32 %v469, 1e-05
          %v471 = vrsqrt.pop %v470
          %v472 = vmul.f32 %v464, %v471
          %v474 = vlaneseq
          %v475 = vshrl.u32 %v474, 7
          %v476 = vsub.s32 0, %v475
          %v477 = vrot.slane %v451, %v476
          %v479 = vmul.f32 %v472, %v477
          %v481 = vlaneseq
          %v482 = vshrl.u32 %v481, 7
          %v483 = vsub.s32 0, %v482
          %v484 = vrot.slane %v452, %v483
          %v486 = vadd.f32 %v479, %v484
          %v487 = vpack.c.bf16 %v486, %v486
          %v488 = vld [vmem:[%s3] sm:$0xf]
          %v489 = vld [vmem:[%s3 + $0x4] sm:$0xf]
          %v490 = vld [vmem:[%s3 + $0x8] sm:$0xf]
          %v491 = vld [vmem:[%s3 + $0xc] sm:$0xf]
          %v492 = vld [vmem:[%s4] sm:$0x1]
          %v494 = vlaneseq
          %v495 = vshrl.u32 %v494, 7
          %v496 = vsub.s32 0, %v495
          %v497 = vrot.slane %v492, %v496
          %v503 = vunpack.c.l.b16 %v488
          %v504 = vunpack.c.l.b16 %v489
          %v505 = vunpack.c.l.b16 %v490
          %v506 = vunpack.c.l.b16 %v491
          %v507 = vpack.c.b16 %v504, %v503
          %v508 = vpack.c.b16 %v506, %v505
          %v512 = vsel %vm458, %v487, 0
          %514 = vmatprep.subr.bf16.mxu0 0
          %515 = vmatpush1.bf16.msra.mxu0 %v507
          %516 = vmatprep.subr.bf16.mxu0 0
          %517 = vmatpush1.bf16.msra.mxu0 %v508
          %518 = vmatprep.subr.bf16.mxu0 0
          %519 = vmatpush1.bf16.msra.mxu0 0
          %520 = vmatprep.subr.bf16.mxu0 0
          %521 = vmatpush1.bf16.msra.mxu0 0
          %522 = vmatprep.subr.bf16.mxu0 0
          %523 = vmatpush1.bf16.msra.mxu0 0
          %524 = vmatprep.subr.bf16.mxu0 0
          %525 = vmatpush1.bf16.msra.mxu0 0
          %526 = vmatprep.subr.bf16.mxu0 0
          %527 = vmatpush1.bf16.msra.mxu0 0
          %528 = vmatprep.subr.bf16.mxu0 0
          %529 = vmatpush1.bf16.msra.mxu0 0
          %530 = vmatprep.subr.bf16.mxu0 0
          %531 = vmatpush1.bf16.msra.mxu0 0
          %532 = vmatprep.subr.bf16.mxu0 0
          %533 = vmatpush1.bf16.msra.mxu0 0
          %534 = vmatprep.subr.bf16.mxu0 0
          %535 = vmatpush1.bf16.msra.mxu0 0
          %536 = vmatprep.subr.bf16.mxu0 0
          %537 = vmatpush1.bf16.msra.mxu0 0
          %538 = vmatprep.subr.bf16.mxu0 0
          %539 = vmatpush1.bf16.msra.mxu0 0
          %540 = vmatprep.subr.bf16.mxu0 0
          %541 = vmatpush1.bf16.msra.mxu0 0
          %542 = vmatprep.subr.bf16.mxu0 0
          %543 = vmatpush1.bf16.msra.mxu0 0
          %544 = vmatprep.subr.bf16.mxu0 0
          %545 = vmatpush1.bf16.msra.mxu0 0
          %546 = vmatprep.mubr.bf16.mxu0 0
          %547 = vmatmul.mubr.bf16.gmra.mrb[0].mxu0 %v512
          %v548 = vpop.f32.mrb[0].mxu0
          %v549 = vadd.f32 %v497, %v548
          %v550 = vpop.f32.mrb[0].mxu0
          %v551 = vpop.f32.mrb[0].mxu0
          %v552 = vpop.f32.mrb[0].mxu0
          %553 = vdwg.mxu0
          %v554 = vmul.f32 %v549, 0.17677669
          %v555 = vpack.c.bf16 %v554, %v554
          %vm556 = vcmask 60416
          %557 = vst.msk [vmem:[#allocation2] sm:$0xf] %vm556, %v555
          %v558 = vpack.c.bf16 %v549, %v549
          %v560 = vunpack.c.l.b16 %v558
          %v561 = vpack.c.b16 %v560, %v560
          %562 = vrot.lane.b32.xlu0 %v561, 96
          %v563 = vpop.permute.xlu0 %562
          %565 = vst.msk [vmem:[#allocation3] sm:$0xf] %vm556, %v563
          %566 = vrot.lane.b32.xlu0 %v561, 64
          %v567 = vpop.permute.xlu0 %566
          %569 = vst.msk [vmem:[#allocation4] sm:$0xf] %vm556, %v567
          %v571 = vunpack.c.l.b16 %v555
          %v572 = vpack.c.b16 %v571, %v571
          %573 = vrot.lane.b32.xlu0 %v572, 120
          %v574 = vpop.permute.xlu0 %573
          %s576 = scalar_lea.vmem [#allocation2], 4
          %577 = vst.msk [vmem:[%s576] sm:$0xf] %vm556, %v574
          %578 = vrot.lane.b32.xlu0 %v561, 88
          %v579 = vpop.permute.xlu0 %578
          %s581 = scalar_lea.vmem [#allocation3], 4
          %582 = vst.msk [vmem:[%s581] sm:$0xf] %vm556, %v579
          %583 = vrot.lane.b32.xlu0 %v561, 56
          %v584 = vpop.permute.xlu0 %583
          %s586 = scalar_lea.vmem [#allocation4], 4
          %587 = vst.msk [vmem:[%s586] sm:$0xf] %vm556, %v584
          %588 = vrot.lane.b32.xlu0 %v572, 112
          %v589 = vpop.permute.xlu0 %588
          %s591 = scalar_lea.vmem [#allocation2], 8
          %592 = vst.msk [vmem:[%s591] sm:$0xf] %vm556, %v589
          %593 = vrot.lane.b32.xlu0 %v561, 80
          %v594 = vpop.permute.xlu0 %593
          %s596 = scalar_lea.vmem [#allocation3], 8
          %597 = vst.msk [vmem:[%s596] sm:$0xf] %vm556, %v594
          %598 = vrot.lane.b32.xlu0 %v561, 48
          %v599 = vpop.permute.xlu0 %598
          %s601 = scalar_lea.vmem [#allocation4], 8
          %602 = vst.msk [vmem:[%s601] sm:$0xf] %vm556, %v599
          %603 = vrot.lane.b32.xlu0 %v572, 104
          %v604 = vpop.permute.xlu0 %603
          %s606 = scalar_lea.vmem [#allocation2], 12
          %607 = vst.msk [vmem:[%s606] sm:$0xf] %vm556, %v604
          %608 = vrot.lane.b32.xlu0 %v561, 72
          %v609 = vpop.permute.xlu0 %608
          %s611 = scalar_lea.vmem [#allocation3], 12
          %612 = vst.msk [vmem:[%s611] sm:$0xf] %vm556, %v609
          %613 = vrot.lane.b32.xlu0 %v561, 40
          %v614 = vpop.permute.xlu0 %613
          %s616 = scalar_lea.vmem [#allocation4], 12
          %617 = vst.msk [vmem:[%s616] sm:$0xf] %vm556, %v614
        $region76: #{tpu_custom_call.1} parent=71 // pred_fallthru
          _
        %s618 = smul.u32 %s32, 8
        %s619 = scalar_lea.vmem %s449, %s618
        %v620 = vld [vmem:[%s619] sm:$0xff]
        %vm621 = vcmask 261120
        %v622 = vsel %vm621, %v620, 0.0
        %623 = vadd.xlane.f32.xlu0 %v622
        %v624 = vpop.xlane.xlu0 %623
        %v625 = vrcp.pop 32.0
        %v626 = vmul.f32 %v624, %v625
        %v627 = vsub.f32 %v620, %v626
        %v628 = vmul.f32 %v627, %v627
        %v629 = vsel %vm621, %v628, 0.0
        %630 = vadd.xlane.f32.xlu0 %v629
        %v631 = vpop.xlane.xlu0 %630
        %v632 = vmul.f32 %v631, %v625
        %v633 = vadd.f32 %v632, 1e-05
        %v634 = vrsqrt.pop %v633
        %v635 = vmul.f32 %v627, %v634
        %v637 = vlaneseq
        %v638 = vshrl.u32 %v637, 7
        %v639 = vsub.s32 0, %v638
        %v640 = vrot.slane %v451, %v639
        %v642 = vmul.f32 %v635, %v640
        %v644 = vlaneseq
        %v645 = vshrl.u32 %v644, 7
        %v646 = vsub.s32 0, %v645
        %v647 = vrot.slane %v452, %v646
        %v649 = vadd.f32 %v642, %v647
        %s650 = sshra.s32 %s618, 3
        %s651 = sand.u32 %s618, 7
        %s652 = smul.addr %s650, 4
        %s653 = scalar_lea.vmem [#allocation2], %s652
        %v654 = vld [vmem:[%s653] sm:$0xf]
        %v655 = vld [vmem:[%s653 + $0x4] sm:$0xf]
        %v656 = vld [vmem:[%s653 + $0x8] sm:$0xf]
        %v657 = vld [vmem:[%s653 + $0xc] sm:$0xf]
        %v658 = vld [vmem:[#allocation3] sm:$0xf]
        %v659 = vld [vmem:[#allocation3 + $0x4] sm:$0xf]
        %v660 = vld [vmem:[#allocation3 + $0x8] sm:$0xf]
        %v661 = vld [vmem:[#allocation3 + $0xc] sm:$0xf]
        %v662 = vld [vmem:[#allocation4] sm:$0xf]
        %v663 = vld [vmem:[#allocation4 + $0x4] sm:$0xf]
        %v664 = vld [vmem:[#allocation4 + $0x8] sm:$0xf]
        %v665 = vld [vmem:[#allocation4 + $0xc] sm:$0xf]
        %vm666 = vcmask 64512
        %v668 = vsel %vm666, %v654, 0
        %v671 = vsel %vm666, %v658, 0
        %673 = vmatprep.subr.bf16.mxu0 0
        %674 = vmatpush1.bf16.xpose.msra.mxu0 %v671
        %675 = vmatprep.subr.bf16.mxu0 0
        %676 = vmatpush1.bf16.xpose.msra.mxu0 0
        %677 = vmatprep.subr.bf16.mxu0 0
        %678 = vmatpush1.bf16.xpose.msra.mxu0 0
        %679 = vmatprep.subr.bf16.mxu0 0
        %680 = vmatpush1.bf16.xpose.msra.mxu0 0
        %681 = vmatprep.subr.bf16.mxu0 0
        %682 = vmatpush1.bf16.xpose.msra.mxu0 0
        %683 = vmatprep.subr.bf16.mxu0 0
        %684 = vmatpush1.bf16.xpose.msra.mxu0 0
        %685 = vmatprep.subr.bf16.mxu0 0
        %686 = vmatpush1.bf16.xpose.msra.mxu0 0
        %687 = vmatprep.subr.bf16.mxu0 0
        %688 = vmatpush1.bf16.xpose.msra.mxu0 0
        %689 = vmatprep.subr.bf16.mxu0 0
        %690 = vmatpush1.bf16.xpose.msra.mxu0 0
        %691 = vmatprep.subr.bf16.mxu0 0
        %692 = vmatpush1.bf16.xpose.msra.mxu0 0
        %693 = vmatprep.subr.bf16.mxu0 0
        %694 = vmatpush1.bf16.xpose.msra.mxu0 0
        %695 = vmatprep.subr.bf16.mxu0 0
        %696 = vmatpush1.bf16.xpose.msra.mxu0 0
        %697 = vmatprep.subr.bf16.mxu0 0
        %698 = vmatpush1.bf16.xpose.msra.mxu0 0
        %699 = vmatprep.subr.bf16.mxu0 0
        %700 = vmatpush1.bf16.xpose.msra.mxu0 0
        %701 = vmatprep.subr.bf16.mxu0 0
        %702 = vmatpush1.bf16.xpose.msra.mxu0 0
        %703 = vmatprep.subr.bf16.mxu0 0
        %704 = vmatpush1.bf16.xpose.msra.mxu0 0
        %705 = vmatprep.mubr.bf16.mxu0 0
        %706 = vmatmul.mubr.bf16.gmra.mrb[0].mxu0 %v668
        %v707 = vpop.f32.mrb[0].mxu0
        %v708 = vadd.f32 0.0, %v707
        %v709 = vpop.f32.mrb[0].mxu0
        %v710 = vpop.f32.mrb[0].mxu0
        %v711 = vpop.f32.mrb[0].mxu0
        %712 = vdwg.mxu0
        %v714 = vsel %vm666, %v655, 0
        %v717 = vsel %vm666, %v659, 0
        %719 = vmatprep.subr.bf16.mxu0 0
        %720 = vmatpush1.bf16.xpose.msra.mxu0 %v717
        %721 = vmatprep.subr.bf16.mxu0 0
        %722 = vmatpush1.bf16.xpose.msra.mxu0 0
        %723 = vmatprep.subr.bf16.mxu0 0
        %724 = vmatpush1.bf16.xpose.msra.mxu0 0
        %725 = vmatprep.subr.bf16.mxu0 0
        %726 = vmatpush1.bf16.xpose.msra.mxu0 0
        %727 = vmatprep.subr.bf16.mxu0 0
        %728 = vmatpush1.bf16.xpose.msra.mxu0 0
        %729 = vmatprep.subr.bf16.mxu0 0
        %730 = vmatpush1.bf16.xpose.msra.mxu0 0
        %731 = vmatprep.subr.bf16.mxu0 0
        %732 = vmatpush1.bf16.xpose.msra.mxu0 0
        %733 = vmatprep.subr.bf16.mxu0 0
        %734 = vmatpush1.bf16.xpose.msra.mxu0 0
        %735 = vmatprep.subr.bf16.mxu0 0
        %736 = vmatpush1.bf16.xpose.msra.mxu0 0
        %737 = vmatprep.subr.bf16.mxu0 0
        %738 = vmatpush1.bf16.xpose.msra.mxu0 0
        %739 = vmatprep.subr.bf16.mxu0 0
        %740 = vmatpush1.bf16.xpose.msra.mxu0 0
        %741 = vmatprep.subr.bf16.mxu0 0
        %742 = vmatpush1.bf16.xpose.msra.mxu0 0
        %743 = vmatprep.subr.bf16.mxu0 0
        %744 = vmatpush1.bf16.xpose.msra.mxu0 0
        %745 = vmatprep.subr.bf16.mxu0 0
        %746 = vmatpush1.bf16.xpose.msra.mxu0 0
        %747 = vmatprep.subr.bf16.mxu0 0
        %748 = vmatpush1.bf16.xpose.msra.mxu0 0
        %749 = vmatprep.subr.bf16.mxu0 0
        %750 = vmatpush1.bf16.xpose.msra.mxu0 0
        %751 = vmatprep.mubr.bf16.mxu0 0
        %752 = vmatmul.mubr.bf16.gmra.mrb[0].mxu0 %v714
        %v753 = vpop.f32.mrb[0].mxu0
        %v754 = vadd.f32 0.0, %v753
        %v755 = vpop.f32.mrb[0].mxu0
        %v756 = vpop.f32.mrb[0].mxu0
        %v757 = vpop.f32.mrb[0].mxu0
        %758 = vdwg.mxu0
        %v760 = vsel %vm666, %v656, 0
        %v763 = vsel %vm666, %v660, 0
        %765 = vmatprep.subr.bf16.mxu0 0
        %766 = vmatpush1.bf16.xpose.msra.mxu0 %v763
        %767 = vmatprep.subr.bf16.mxu0 0
        %768 = vmatpush1.bf16.xpose.msra.mxu0 0
        %769 = vmatprep.subr.bf16.mxu0 0
        %770 = vmatpush1.bf16.xpose.msra.mxu0 0
        %771 = vmatprep.subr.bf16.mxu0 0
        %772 = vmatpush1.bf16.xpose.msra.mxu0 0
        %773 = vmatprep.subr.bf16.mxu0 0
        %774 = vmatpush1.bf16.xpose.msra.mxu0 0
        %775 = vmatprep.subr.bf16.mxu0 0
        %776 = vmatpush1.bf16.xpose.msra.mxu0 0
        %777 = vmatprep.subr.bf16.mxu0 0
        %778 = vmatpush1.bf16.xpose.msra.mxu0 0
        %779 = vmatprep.subr.bf16.mxu0 0
        %780 = vmatpush1.bf16.xpose.msra.mxu0 0
        %781 = vmatprep.subr.bf16.mxu0 0
        %782 = vmatpush1.bf16.xpose.msra.mxu0 0
        %783 = vmatprep.subr.bf16.mxu0 0
        %784 = vmatpush1.bf16.xpose.msra.mxu0 0
        %785 = vmatprep.subr.bf16.mxu0 0
        %786 = vmatpush1.bf16.xpose.msra.mxu0 0
        %787 = vmatprep.subr.bf16.mxu0 0
        %788 = vmatpush1.bf16.xpose.msra.mxu0 0
        %789 = vmatprep.subr.bf16.mxu0 0
        %790 = vmatpush1.bf16.xpose.msra.mxu0 0
        %791 = vmatprep.subr.bf16.mxu0 0
        %792 = vmatpush1.bf16.xpose.msra.mxu0 0
        %793 = vmatprep.subr.bf16.mxu0 0
        %794 = vmatpush1.bf16.xpose.msra.mxu0 0
        %795 = vmatprep.subr.bf16.mxu0 0
        %796 = vmatpush1.bf16.xpose.msra.mxu0 0
        %797 = vmatprep.mubr.bf16.mxu0 0
        %798 = vmatmul.mubr.bf16.gmra.mrb[0].mxu0 %v760
        %v799 = vpop.f32.mrb[0].mxu0
        %v800 = vadd.f32 0.0, %v799
        %v801 = vpop.f32.mrb[0].mxu0
        %v802 = vpop.f32.mrb[0].mxu0
        %v803 = vpop.f32.mrb[0].mxu0
        %804 = vdwg.mxu0
        %v806 = vsel %vm666, %v657, 0
        %v809 = vsel %vm666, %v661, 0
        %811 = vmatprep.subr.bf16.mxu0 0
        %812 = vmatpush1.bf16.xpose.msra.mxu0 %v809
        %813 = vmatprep.subr.bf16.mxu0 0
        %814 = vmatpush1.bf16.xpose.msra.mxu0 0
        %815 = vmatprep.subr.bf16.mxu0 0
        %816 = vmatpush1.bf16.xpose.msra.mxu0 0
        %817 = vmatprep.subr.bf16.mxu0 0
        %818 = vmatpush1.bf16.xpose.msra.mxu0 0
        %819 = vmatprep.subr.bf16.mxu0 0
        %820 = vmatpush1.bf16.xpose.msra.mxu0 0
        %821 = vmatprep.subr.bf16.mxu0 0
        %822 = vmatpush1.bf16.xpose.msra.mxu0 0
        %823 = vmatprep.subr.bf16.mxu0 0
        %824 = vmatpush1.bf16.xpose.msra.mxu0 0
        %825 = vmatprep.subr.bf16.mxu0 0
        %826 = vmatpush1.bf16.xpose.msra.mxu0 0
        %827 = vmatprep.subr.bf16.mxu0 0
        %828 = vmatpush1.bf16.xpose.msra.mxu0 0
        %829 = vmatprep.subr.bf16.mxu0 0
        %830 = vmatpush1.bf16.xpose.msra.mxu0 0
        %831 = vmatprep.subr.bf16.mxu0 0
        %832 = vmatpush1.bf16.xpose.msra.mxu0 0
        %833 = vmatprep.subr.bf16.mxu0 0
        %834 = vmatpush1.bf16.xpose.msra.mxu0 0
        %835 = vmatprep.subr.bf16.mxu0 0
        %836 = vmatpush1.bf16.xpose.msra.mxu0 0
        %837 = vmatprep.subr.bf16.mxu0 0
        %838 = vmatpush1.bf16.xpose.msra.mxu0 0
        %839 = vmatprep.subr.bf16.mxu0 0
        %840 = vmatpush1.bf16.xpose.msra.mxu0 0
        %841 = vmatprep.subr.bf16.mxu0 0
        %842 = vmatpush1.bf16.xpose.msra.mxu0 0
        %843 = vmatprep.mubr.bf16.mxu0 0
        %844 = vmatmul.mubr.bf16.gmra.mrb[0].mxu0 %v806
        %v845 = vpop.f32.mrb[0].mxu0
        %v846 = vadd.f32 0.0, %v845
        %v847 = vpop.f32.mrb[0].mxu0
        %v848 = vpop.f32.mrb[0].mxu0
        %v849 = vpop.f32.mrb[0].mxu0
        %850 = vdwg.mxu0
        %v851 = vlaneseq
        %v852 = vshrl.u32 %v851, 7
        %v853 = vstv %s618
        %v854 = vadd.s32 %v853, %v852
        %v855 = vlaneseq
        %v856 = vand.u32 %v855, 127
        %vm857 = vcmp.le.s32.totalorder %v856, %v854
        %v858 = vsel %vm857, 1, 0
        %vm859 = vcmp.eq.s32.totalorder %v858, 1
        %v860 = vsel %vm859, %v708, -1e+30
        %v861 = vsel %vm859, %v754, -1e+30
        %v862 = vsel %vm859, %v800, -1e+30
        %v863 = vsel %vm859, %v846, -1e+30
        %v864 = vsel %vm666, %v860, -inf
        %865 = vmax.xlane.f32.xlu0 %v864
        %v866 = vpop.xlane.xlu0 %865
        %v867 = vsel %vm666, %v861, -inf
        %868 = vmax.xlane.f32.xlu0 %v867
        %v869 = vpop.xlane.xlu0 %868
        %v870 = vsel %vm666, %v862, -inf
        %871 = vmax.xlane.f32.xlu0 %v870
        %v872 = vpop.xlane.xlu0 %871
        %v873 = vsel %vm666, %v863, -inf
        %874 = vmax.xlane.f32.xlu0 %v873
        %v875 = vpop.xlane.xlu0 %874
        %v876 = vsub.f32 %v860, %v866
        %v877 = vsub.f32 %v861, %v869
        %v878 = vsub.f32 %v862, %v872
        %v879 = vsub.f32 %v863, %v875
        %v880 = vmul.f32 %v876, 1.442695
        %v881 = vpow.pop %v880
        %v882 = vmul.f32 %v877, 1.442695
        %v883 = vpow.pop %v882
        %v884 = vmul.f32 %v878, 1.442695
        %v885 = vpow.pop %v884
        %v886 = vmul.f32 %v879, 1.442695
        %v887 = vpow.pop %v886
        %v888 = vsel %vm666, %v881, 0.0
        %889 = vadd.xlane.f32.xlu0 %v888
        %v890 = vpop.xlane.xlu0 %889
        %v891 = vsel %vm666, %v883, 0.0
        %892 = vadd.xlane.f32.xlu0 %v891
        %v893 = vpop.xlane.xlu0 %892
        %v894 = vsel %vm666, %v885, 0.0
        %895 = vadd.xlane.f32.xlu0 %v894
        %v896 = vpop.xlane.xlu0 %895
        %v897 = vsel %vm666, %v887, 0.0
        %898 = vadd.xlane.f32.xlu0 %v897
        %v899 = vpop.xlane.xlu0 %898
        %v900 = vrcp.pop %v890
        %v901 = vrcp.pop %v893
        %v902 = vrcp.pop %v896
        %v903 = vrcp.pop %v899
        %v904 = vmul.f32 %v881, %v900
        %v905 = vmul.f32 %v883, %v901
        %v906 = vmul.f32 %v885, %v902
        %v907 = vmul.f32 %v887, %v903
        %v908 = vpack.c.bf16 %v904, %v904
        %v909 = vpack.c.bf16 %v905, %v905
        %v910 = vpack.c.bf16 %v906, %v906
        %v911 = vpack.c.bf16 %v907, %v907
        %v913 = vsel %vm666, %v908, 0
        %vm915 = vcmask 1043456
        %v917 = vsel %vm915, %v662, 0
        %919 = vmatprep.subr.bf16.mxu0 0
        %920 = vmatpush1.bf16.msra.mxu0 %v917
        %921 = vmatprep.subr.bf16.mxu0 0
        %922 = vmatpush1.bf16.msra.mxu0 0
        %923 = vmatprep.subr.bf16.mxu0 0
        %924 = vmatpush1.bf16.msra.mxu0 0
        %925 = vmatprep.subr.bf16.mxu0 0
        %926 = vmatpush1.bf16.msra.mxu0 0
        %927 = vmatprep.subr.bf16.mxu0 0
        %928 = vmatpush1.bf16.msra.mxu0 0
        %929 = vmatprep.subr.bf16.mxu0 0
        %930 = vmatpush1.bf16.msra.mxu0 0
        %931 = vmatprep.subr.bf16.mxu0 0
        %932 = vmatpush1.bf16.msra.mxu0 0
        %933 = vmatprep.subr.bf16.mxu0 0
        %934 = vmatpush1.bf16.msra.mxu0 0
        %935 = vmatprep.subr.bf16.mxu0 0
        %936 = vmatpush1.bf16.msra.mxu0 0
        %937 = vmatprep.subr.bf16.mxu0 0
        %938 = vmatpush1.bf16.msra.mxu0 0
        %939 = vmatprep.subr.bf16.mxu0 0
        %940 = vmatpush1.bf16.msra.mxu0 0
        %941 = vmatprep.subr.bf16.mxu0 0
        %942 = vmatpush1.bf16.msra.mxu0 0
        %943 = vmatprep.subr.bf16.mxu0 0
        %944 = vmatpush1.bf16.msra.mxu0 0
        %945 = vmatprep.subr.bf16.mxu0 0
        %946 = vmatpush1.bf16.msra.mxu0 0
        %947 = vmatprep.subr.bf16.mxu0 0
        %948 = vmatpush1.bf16.msra.mxu0 0
        %949 = vmatprep.subr.bf16.mxu0 0
        %950 = vmatpush1.bf16.msra.mxu0 0
        %951 = vmatprep.mubr.bf16.mxu0 0
        %952 = vmatmul.mubr.bf16.gmra.mrb[0].mxu0 %v913
        %v953 = vpop.f32.mrb[0].mxu0
        %v954 = vadd.f32 0.0, %v953
        %v955 = vpop.f32.mrb[0].mxu0
        %v956 = vpop.f32.mrb[0].mxu0
        %v957 = vpop.f32.mrb[0].mxu0
        %958 = vdwg.mxu0
        %v960 = vsel %vm666, %v909, 0
        %v963 = vsel %vm915, %v663, 0
        %965 = vmatprep.subr.bf16.mxu0 0
        %966 = vmatpush1.bf16.msra.mxu0 %v963
        %967 = vmatprep.subr.bf16.mxu0 0
        %968 = vmatpush1.bf16.msra.mxu0 0
        %969 = vmatprep.subr.bf16.mxu0 0
        %970 = vmatpush1.bf16.msra.mxu0 0
        %971 = vmatprep.subr.bf16.mxu0 0
        %972 = vmatpush1.bf16.msra.mxu0 0
        %973 = vmatprep.subr.bf16.mxu0 0
        %974 = vmatpush1.bf16.msra.mxu0 0
        %975 = vmatprep.subr.bf16.mxu0 0
        %976 = vmatpush1.bf16.msra.mxu0 0
        %977 = vmatprep.subr.bf16.mxu0 0
        %978 = vmatpush1.bf16.msra.mxu0 0
        %979 = vmatprep.subr.bf16.mxu0 0
        %980 = vmatpush1.bf16.msra.mxu0 0
        %981 = vmatprep.subr.bf16.mxu0 0
        %982 = vmatpush1.bf16.msra.mxu0 0
        %983 = vmatprep.subr.bf16.mxu0 0
        %984 = vmatpush1.bf16.msra.mxu0 0
        %985 = vmatprep.subr.bf16.mxu0 0
        %986 = vmatpush1.bf16.msra.mxu0 0
        %987 = vmatprep.subr.bf16.mxu0 0
        %988 = vmatpush1.bf16.msra.mxu0 0
        %989 = vmatprep.subr.bf16.mxu0 0
        %990 = vmatpush1.bf16.msra.mxu0 0
        %991 = vmatprep.subr.bf16.mxu0 0
        %992 = vmatpush1.bf16.msra.mxu0 0
        %993 = vmatprep.subr.bf16.mxu0 0
        %994 = vmatpush1.bf16.msra.mxu0 0
        %995 = vmatprep.subr.bf16.mxu0 0
        %996 = vmatpush1.bf16.msra.mxu0 0
        %997 = vmatprep.mubr.bf16.mxu0 0
        %998 = vmatmul.mubr.bf16.gmra.mrb[0].mxu0 %v960
        %v999 = vpop.f32.mrb[0].mxu0
        %v1000 = vadd.f32 0.0, %v999
        %v1001 = vpop.f32.mrb[0].mxu0
        %v1002 = vpop.f32.mrb[0].mxu0
        %v1003 = vpop.f32.mrb[0].mxu0
        %1004 = vdwg.mxu0
        %v1006 = vsel %vm666, %v910, 0
        %v1009 = vsel %vm915, %v664, 0
        %1011 = vmatprep.subr.bf16.mxu0 0
        %1012 = vmatpush1.bf16.msra.mxu0 %v1009
        %1013 = vmatprep.subr.bf16.mxu0 0
        %1014 = vmatpush1.bf16.msra.mxu0 0
        %1015 = vmatprep.subr.bf16.mxu0 0
        %1016 = vmatpush1.bf16.msra.mxu0 0
        %1017 = vmatprep.subr.bf16.mxu0 0
        %1018 = vmatpush1.bf16.msra.mxu0 0
        %1019 = vmatprep.subr.bf16.mxu0 0
        %1020 = vmatpush1.bf16.msra.mxu0 0
        %1021 = vmatprep.subr.bf16.mxu0 0
        %1022 = vmatpush1.bf16.msra.mxu0 0
        %1023 = vmatprep.subr.bf16.mxu0 0
        %1024 = vmatpush1.bf16.msra.mxu0 0
        %1025 = vmatprep.subr.bf16.mxu0 0
        %1026 = vmatpush1.bf16.msra.mxu0 0
        %1027 = vmatprep.subr.bf16.mxu0 0
        %1028 = vmatpush1.bf16.msra.mxu0 0
        %1029 = vmatprep.subr.bf16.mxu0 0
        %1030 = vmatpush1.bf16.msra.mxu0 0
        %1031 = vmatprep.subr.bf16.mxu0 0
        %1032 = vmatpush1.bf16.msra.mxu0 0
        %1033 = vmatprep.subr.bf16.mxu0 0
        %1034 = vmatpush1.bf16.msra.mxu0 0
        %1035 = vmatprep.subr.bf16.mxu0 0
        %1036 = vmatpush1.bf16.msra.mxu0 0
        %1037 = vmatprep.subr.bf16.mxu0 0
        %1038 = vmatpush1.bf16.msra.mxu0 0
        %1039 = vmatprep.subr.bf16.mxu0 0
        %1040 = vmatpush1.bf16.msra.mxu0 0
        %1041 = vmatprep.subr.bf16.mxu0 0
        %1042 = vmatpush1.bf16.msra.mxu0 0
        %1043 = vmatprep.mubr.bf16.mxu0 0
        %1044 = vmatmul.mubr.bf16.gmra.mrb[0].mxu0 %v1006
        %v1045 = vpop.f32.mrb[0].mxu0
        %v1046 = vadd.f32 0.0, %v1045
        %v1047 = vpop.f32.mrb[0].mxu0
        %v1048 = vpop.f32.mrb[0].mxu0
        %v1049 = vpop.f32.mrb[0].mxu0
        %1050 = vdwg.mxu0
        %v1052 = vsel %vm666, %v911, 0
        %v1055 = vsel %vm915, %v665, 0
        %1057 = vmatprep.subr.bf16.mxu0 0
        %1058 = vmatpush1.bf16.msra.mxu0 %v1055
        %1059 = vmatprep.subr.bf16.mxu0 0
        %1060 = vmatpush1.bf16.msra.mxu0 0
        %1061 = vmatprep.subr.bf16.mxu0 0
        %1062 = vmatpush1.bf16.msra.mxu0 0
        %1063 = vmatprep.subr.bf16.mxu0 0
        %1064 = vmatpush1.bf16.msra.mxu0 0
        %1065 = vmatprep.subr.bf16.mxu0 0
        %1066 = vmatpush1.bf16.msra.mxu0 0
        %1067 = vmatprep.subr.bf16.mxu0 0
        %1068 = vmatpush1.bf16.msra.mxu0 0
        %1069 = vmatprep.subr.bf16.mxu0 0
        %1070 = vmatpush1.bf16.msra.mxu0 0
        %1071 = vmatprep.subr.bf16.mxu0 0
        %1072 = vmatpush1.bf16.msra.mxu0 0
        %1073 = vmatprep.subr.bf16.mxu0 0
        %1074 = vmatpush1.bf16.msra.mxu0 0
        %1075 = vmatprep.subr.bf16.mxu0 0
        %1076 = vmatpush1.bf16.msra.mxu0 0
        %1077 = vmatprep.subr.bf16.mxu0 0
        %1078 = vmatpush1.bf16.msra.mxu0 0
        %1079 = vmatprep.subr.bf16.mxu0 0
        %1080 = vmatpush1.bf16.msra.mxu0 0
        %1081 = vmatprep.subr.bf16.mxu0 0
        %1082 = vmatpush1.bf16.msra.mxu0 0
        %1083 = vmatprep.subr.bf16.mxu0 0
        %1084 = vmatpush1.bf16.msra.mxu0 0
        %1085 = vmatprep.subr.bf16.mxu0 0
        %1086 = vmatpush1.bf16.msra.mxu0 0
        %1087 = vmatprep.subr.bf16.mxu0 0
        %1088 = vmatpush1.bf16.msra.mxu0 0
        %1089 = vmatprep.mubr.bf16.mxu0 0
        %1090 = vmatmul.mubr.bf16.gmra.mrb[0].mxu0 %v1052
        %v1091 = vpop.f32.mrb[0].mxu0
        %v1092 = vadd.f32 0.0, %v1091
        %v1093 = vpop.f32.mrb[0].mxu0
        %v1094 = vpop.f32.mrb[0].mxu0
        %v1095 = vpop.f32.mrb[0].mxu0
        %1096 = vdwg.mxu0
        %1098 = vrot.lane.b32.xlu0 %v1000, 8
        %v1099 = vpop.permute.xlu0 %1098
        %1102 = vrot.lane.b32.xlu0 %v1046, 16
        %v1103 = vpop.permute.xlu0 %1102
        %1106 = vrot.lane.b32.xlu0 %v1092, 24
        %v1107 = vpop.permute.xlu0 %1106
        %v1109 = vsel %vm666, %v954, %v1099
        %vm1110 = vcmask 130048
        %v1111 = vsel %vm1110, %v1109, %v1103
        %vm1112 = vcmask 195584
        %v1113 = vsel %vm1112, %v1111, %v1107
        %v1114 = vpack.c.bf16 %v1113, %v1113
        %v1115 = vld [vmem:[%s5] sm:$0xf]
        %v1116 = vld [vmem:[%s5 + $0x4] sm:$0xf]
        %v1117 = vld [vmem:[%s5 + $0x8] sm:$0xf]
        %v1118 = vld [vmem:[%s5 + $0xc] sm:$0xf]
        %v1119 = vld [vmem:[%s6] sm:$0x1]
        %v1121 = vlaneseq
        %v1122 = vshrl.u32 %v1121, 7
        %v1123 = vsub.s32 0, %v1122
        %v1124 = vrot.slane %v1119, %v1123
        %v1130 = vunpack.c.l.b16 %v1115
        %v1131 = vunpack.c.l.b16 %v1116
        %v1132 = vunpack.c.l.b16 %v1117
        %v1133 = vunpack.c.l.b16 %v1118
        %v1134 = vpack.c.b16 %v1131, %v1130
        %v1135 = vpack.c.b16 %v1133, %v1132
        %v1139 = vsel %vm621, %v1114, 0
        %1141 = vmatprep.subr.bf16.mxu0 0
        %1142 = vmatpush1.bf16.msra.mxu0 %v1134
        %1143 = vmatprep.subr.bf16.mxu0 0
        %1144 = vmatpush1.bf16.msra.mxu0 %v1135
        %1145 = vmatprep.subr.bf16.mxu0 0
        %1146 = vmatpush1.bf16.msra.mxu0 0
        %1147 = vmatprep.subr.bf16.mxu0 0
        %1148 = vmatpush1.bf16.msra.mxu0 0
        %1149 = vmatprep.subr.bf16.mxu0 0
        %1150 = vmatpush1.bf16.msra.mxu0 0
        %1151 = vmatprep.subr.bf16.mxu0 0
        %1152 = vmatpush1.bf16.msra.mxu0 0
        %1153 = vmatprep.subr.bf16.mxu0 0
        %1154 = vmatpush1.bf16.msra.mxu0 0
        %1155 = vmatprep.subr.bf16.mxu0 0
        %1156 = vmatpush1.bf16.msra.mxu0 0
        %1157 = vmatprep.subr.bf16.mxu0 0
        %1158 = vmatpush1.bf16.msra.mxu0 0
        %1159 = vmatprep.subr.bf16.mxu0 0
        %1160 = vmatpush1.bf16.msra.mxu0 0
        %1161 = vmatprep.subr.bf16.mxu0 0
        %1162 = vmatpush1.bf16.msra.mxu0 0
        %1163 = vmatprep.subr.bf16.mxu0 0
        %1164 = vmatpush1.bf16.msra.mxu0 0
        %1165 = vmatprep.subr.bf16.mxu0 0
        %1166 = vmatpush1.bf16.msra.mxu0 0
        %1167 = vmatprep.subr.bf16.mxu0 0
        %1168 = vmatpush1.bf16.msra.mxu0 0
        %1169 = vmatprep.subr.bf16.mxu0 0
        %1170 = vmatpush1.bf16.msra.mxu0 0
        %1171 = vmatprep.subr.bf16.mxu0 0
        %1172 = vmatpush1.bf16.msra.mxu0 0
        %1173 = vmatprep.mubr.bf16.mxu0 0
        %1174 = vmatmul.mubr.bf16.gmra.mrb[0].mxu0 %v1139
        %v1175 = vpop.f32.mrb[0].mxu0
        %v1176 = vadd.f32 %v1124, %v1175
        %v1177 = vpop.f32.mrb[0].mxu0
        %v1178 = vpop.f32.mrb[0].mxu0
        %v1179 = vpop.f32.mrb[0].mxu0
        %1180 = vdwg.mxu0
        %v1181 = vadd.f32 %v649, %v1176
        %v1182 = vld [vmem:[%s7] sm:$0x1]
        %v1183 = vld [vmem:[%s8] sm:$0x1]
        %v1184 = vsel %vm621, %v1181, 0.0
        %1185 = vadd.xlane.f32.xlu0 %v1184
        %v1186 = vpop.xlane.xlu0 %1185
        %v1187 = vmul.f32 %v1186, %v625
        %v1188 = vsub.f32 %v1181, %v1187
        %v1189 = vmul.f32 %v1188, %v1188
        %v1190 = vsel %vm621, %v1189, 0.0
        %1191 = vadd.xlane.f32.xlu0 %v1190
        %v1192 = vpop.xlane.xlu0 %1191
        %v1193 = vmul.f32 %v1192, %v625
        %v1194 = vadd.f32 %v1193, 1e-05
        %v1195 = vrsqrt.pop %v1194
        %v1196 = vmul.f32 %v1188, %v1195
        %v1198 = vlaneseq
        %v1199 = vshrl.u32 %v1198, 7
        %v1200 = vsub.s32 0, %v1199
        %v1201 = vrot.slane %v1182, %v1200
        %v1203 = vmul.f32 %v1196, %v1201
        %v1205 = vlaneseq
        %v1206 = vshrl.u32 %v1205, 7
        %v1207 = vsub.s32 0, %v1206
        %v1208 = vrot.slane %v1183, %v1207
        %v1210 = vadd.f32 %v1203, %v1208
        %v1211 = vpack.c.bf16 %v1210, %v1210
        %v1212 = vld [vmem:[%s9] sm:$0xf]
        %v1213 = vld [vmem:[%s9 + $0x4] sm:$0xf]
        %v1214 = vld [vmem:[%s9 + $0x8] sm:$0xf]
        %v1215 = vld [vmem:[%s9 + $0xc] sm:$0xf]
        %v1216 = vld [vmem:[%s10] sm:$0x1]
        %v1218 = vlaneseq
        %v1219 = vshrl.u32 %v1218, 7
        %v1220 = vsub.s32 0, %v1219
        %v1221 = vrot.slane %v1216, %v1220
        %v1227 = vunpack.c.l.b16 %v1212
        %v1228 = vunpack.c.l.b16 %v1213
        %v1229 = vunpack.c.l.b16 %v1214
        %v1230 = vunpack.c.l.b16 %v1215
        %v1231 = vpack.c.b16 %v1228, %v1227
        %v1232 = vpack.c.b16 %v1230, %v1229
        %v1236 = vsel %vm621, %v1211, 0
        %1238 = vmatprep.subr.bf16.mxu0 0
        %1239 = vmatpush1.bf16.msra.mxu0 %v1231
        %1240 = vmatprep.subr.bf16.mxu0 0
        %1241 = vmatpush1.bf16.msra.mxu0 %v1232
        %1242 = vmatprep.subr.bf16.mxu0 0
        %1243 = vmatpush1.bf16.msra.mxu0 0
        %1244 = vmatprep.subr.bf16.mxu0 0
        %1245 = vmatpush1.bf16.msra.mxu0 0
        %1246 = vmatprep.subr.bf16.mxu0 0
        %1247 = vmatpush1.bf16.msra.mxu0 0
        %1248 = vmatprep.subr.bf16.mxu0 0
        %1249 = vmatpush1.bf16.msra.mxu0 0
        %1250 = vmatprep.subr.bf16.mxu0 0
        %1251 = vmatpush1.bf16.msra.mxu0 0
        %1252 = vmatprep.subr.bf16.mxu0 0
        %1253 = vmatpush1.bf16.msra.mxu0 0
        %1254 = vmatprep.subr.bf16.mxu0 0
        %1255 = vmatpush1.bf16.msra.mxu0 0
        %1256 = vmatprep.subr.bf16.mxu0 0
        %1257 = vmatpush1.bf16.msra.mxu0 0
        %1258 = vmatprep.subr.bf16.mxu0 0
        %1259 = vmatpush1.bf16.msra.mxu0 0
        %1260 = vmatprep.subr.bf16.mxu0 0
        %1261 = vmatpush1.bf16.msra.mxu0 0
        %1262 = vmatprep.subr.bf16.mxu0 0
        %1263 = vmatpush1.bf16.msra.mxu0 0
        %1264 = vmatprep.subr.bf16.mxu0 0
        %1265 = vmatpush1.bf16.msra.mxu0 0
        %1266 = vmatprep.subr.bf16.mxu0 0
        %1267 = vmatpush1.bf16.msra.mxu0 0
        %1268 = vmatprep.subr.bf16.mxu0 0
        %1269 = vmatpush1.bf16.msra.mxu0 0
        %1270 = vmatprep.mubr.bf16.mxu0 0
        %1271 = vmatmul.mubr.bf16.gmra.mrb[0].mxu0 %v1236
        %v1272 = vpop.f32.mrb[0].mxu0
        %v1273 = vadd.f32 %v1221, %v1272
        %v1274 = vpop.f32.mrb[0].mxu0
        %v1275 = vpop.f32.mrb[0].mxu0
        %v1276 = vpop.f32.mrb[0].mxu0
        %1277 = vdwg.mxu0
        %v1278 = vmax.f32 %v1273, 0.0
        %v1279 = vpack.c.bf16 %v1278, %v1278
        %v1280 = vld [vmem:[%s11] sm:$0xf]
        %v1281 = vld [vmem:[%s11 + $0x4] sm:$0xf]
        %v1282 = vld [vmem:[%s11 + $0x8] sm:$0xf]
        %v1283 = vld [vmem:[%s11 + $0xc] sm:$0xf]
        %v1284 = vld [vmem:[%s11 + $0x10] sm:$0xf]
        %v1285 = vld [vmem:[%s11 + $0x14] sm:$0xf]
        %v1286 = vld [vmem:[%s11 + $0x18] sm:$0xf]
        %v1287 = vld [vmem:[%s11 + $0x1c] sm:$0xf]
        %v1288 = vld [vmem:[%s11 + $0x20] sm:$0xf]
        %v1289 = vld [vmem:[%s11 + $0x24] sm:$0xf]
        %v1290 = vld [vmem:[%s11 + $0x28] sm:$0xf]
        %v1291 = vld [vmem:[%s11 + $0x2c] sm:$0xf]
        %v1292 = vld [vmem:[%s11 + $0x30] sm:$0xf]
        %v1293 = vld [vmem:[%s11 + $0x34] sm:$0xf]
        %v1294 = vld [vmem:[%s11 + $0x38] sm:$0xf]
        %v1295 = vld [vmem:[%s11 + $0x3c] sm:$0xf]
        %v1296 = vld [vmem:[%s12] sm:$0x1]
        %v1298 = vlaneseq
        %v1299 = vshrl.u32 %v1298, 7
        %v1300 = vsub.s32 0, %v1299
        %v1301 = vrot.slane %v1296, %v1300
        %v1319 = vunpack.c.l.b16 %v1280
        %v1320 = vunpack.c.l.b16 %v1281
        %v1321 = vunpack.c.l.b16 %v1282
        %v1322 = vunpack.c.l.b16 %v1283
        %v1323 = vunpack.c.l.b16 %v1284
        %v1324 = vunpack.c.l.b16 %v1285
        %v1325 = vunpack.c.l.b16 %v1286
        %v1326 = vunpack.c.l.b16 %v1287
        %v1327 = vunpack.c.l.b16 %v1288
        %v1328 = vunpack.c.l.b16 %v1289
        %v1329 = vunpack.c.l.b16 %v1290
        %v1330 = vunpack.c.l.b16 %v1291
        %v1331 = vunpack.c.l.b16 %v1292
        %v1332 = vunpack.c.l.b16 %v1293
        %v1333 = vunpack.c.l.b16 %v1294
        %v1334 = vunpack.c.l.b16 %v1295
        %v1335 = vpack.c.b16 %v1320, %v1319
        %v1336 = vpack.c.b16 %v1322, %v1321
        %v1337 = vpack.c.b16 %v1324, %v1323
        %v1338 = vpack.c.b16 %v1326, %v1325
        %v1339 = vpack.c.b16 %v1328, %v1327
        %v1340 = vpack.c.b16 %v1330, %v1329
        %v1341 = vpack.c.b16 %v1332, %v1331
        %v1342 = vpack.c.b16 %v1334, %v1333
        %1351 = vmatprep.subr.bf16.mxu0 0
        %1352 = vmatpush1.bf16.msra.mxu0 %v1335
        %1353 = vmatprep.subr.bf16.mxu0 0
        %1354 = vmatpush1.bf16.msra.mxu0 %v1336
        %1355 = vmatprep.subr.bf16.mxu0 0
        %1356 = vmatpush1.bf16.msra.mxu0 %v1337
        %1357 = vmatprep.subr.bf16.mxu0 0
        %1358 = vmatpush1.bf16.msra.mxu0 %v1338
        %1359 = vmatprep.subr.bf16.mxu0 0
        %1360 = vmatpush1.bf16.msra.mxu0 %v1339
        %1361 = vmatprep.subr.bf16.mxu0 0
        %1362 = vmatpush1.bf16.msra.mxu0 %v1340
        %1363 = vmatprep.subr.bf16.mxu0 0
        %1364 = vmatpush1.bf16.msra.mxu0 %v1341
        %1365 = vmatprep.subr.bf16.mxu0 0
        %1366 = vmatpush1.bf16.msra.mxu0 %v1342
        %1367 = vmatprep.subr.bf16.mxu0 0
        %1368 = vmatpush1.bf16.msra.mxu0 0
        %1369 = vmatprep.subr.bf16.mxu0 0
        %1370 = vmatpush1.bf16.msra.mxu0 0
        %1371 = vmatprep.subr.bf16.mxu0 0
        %1372 = vmatpush1.bf16.msra.mxu0 0
        %1373 = vmatprep.subr.bf16.mxu0 0
        %1374 = vmatpush1.bf16.msra.mxu0 0
        %1375 = vmatprep.subr.bf16.mxu0 0
        %1376 = vmatpush1.bf16.msra.mxu0 0
        %1377 = vmatprep.subr.bf16.mxu0 0
        %1378 = vmatpush1.bf16.msra.mxu0 0
        %1379 = vmatprep.subr.bf16.mxu0 0
        %1380 = vmatpush1.bf16.msra.mxu0 0
        %1381 = vmatprep.subr.bf16.mxu0 0
        %1382 = vmatpush1.bf16.msra.mxu0 0
        %1383 = vmatprep.mubr.bf16.mxu0 0
        %1384 = vmatmul.mubr.bf16.gmra.mrb[0].mxu0 %v1279
        %v1385 = vpop.f32.mrb[0].mxu0
        %v1386 = vadd.f32 %v1301, %v1385
        %v1387 = vpop.f32.mrb[0].mxu0
        %v1388 = vpop.f32.mrb[0].mxu0
        %v1389 = vpop.f32.mrb[0].mxu0
        %1390 = vdwg.mxu0
        %v1391 = vadd.f32 %v1210, %v1386
        %1392 = vst.msk [vmem:[%s445] sm:$0xff] %vm621, %v1391
        %s1393 = sand.u32 %s327, 1
        %s1394 = scalar_lea.sflag [#allocation6], %s1393
        %s1395 = sand.u32 %s327, 1
        %s1396 = smul.addr %s1395, 8
        %s1397 = scalar_lea.vmem [#allocation5], %s1396
        // Predicated region
        $region77: #{tpu_custom_call.1} parent=71 // pred_check
          %p1398 = pneg %p337
        $region78: #{tpu_custom_call.1} parent=71 // pred_check_branch
          %1400 = sbr.rel (%p1398) target = $region80
        $region79: #{tpu_custom_call.1} parent=71 // pred_region
          %s1402 = ssub.s32 128, 128
          %1403 = vsyncadd %s1394, %s1402
          %s1404 = sadd.s32 %s32, %s31
          %s1405 = smul.addr %s1404, 128
          %s1406 = scalar_lea.hbm %s13, %s1405
          %s1408 = sshll.u32 %s1397, 4
          %s1409 = int_to_ptr.vmem [resolvable:$true] %s1408
          %1411 = dma.vmem_to_hbm [thread:$0]  %s1409, 128, %s1406, %s1394
        $region80: #{tpu_custom_call.1} parent=71 // pred_fallthru
          _
      $region72: #{tpu_custom_call.1} parent=5 // pred_fallthru
        _
      %p1412 = scmp.le.s32.totalorder 2, %s22
      // Predicated region
      $region81: #{tpu_custom_call.1} parent=5 // pred_check
        %p1413 = pneg %p1412
      $region82: #{tpu_custom_call.1} parent=5 // pred_check_branch
        %1415 = sbr.rel (%p1413) target = $region84
      $region83: #{tpu_custom_call.1} parent=5 // pred_region
        %s1416 = ssub.s32 %s22, 2
        // Predicated region
        $region85: #{tpu_custom_call.1} parent=83 // pred_check
          %p1417 = pneg %p343
        $region86: #{tpu_custom_call.1} parent=83 // pred_check_branch
          %1419 = sbr.rel (%p1417) target = $region88
        $region87: #{tpu_custom_call.1} parent=83 // pred_region
          %s1420 = sand.u32 %s328, 1
          %s1421 = scalar_lea.sflag [#allocation6], %s1420
          %s1422 = sand.u32 %s328, 1
          %s1423 = smul.addr %s1422, 8
          %s1424 = scalar_lea.vmem [#allocation5], %s1423
          %1425 = dma.done %s1421, 128
        $region88: #{tpu_custom_call.1} parent=83 // pred_fallthru
          _
      $region84: #{tpu_custom_call.1} parent=5 // pred_fallthru
        _
    $region6: #{tpu_custom_call.1} parent=1 // loop_footer
      %s26 = sadd.s32 1, %s22
    $region7: #{tpu_custom_call.1} parent=1 // loop_footer_branch
      %21 = sbr.rel target = $region3
    $region8: #{tpu_custom_call.1} parent=1 // loop_exit
      _
    %1426 = vsyncpa [#allocation6], 1
    %s1427 = scalar_lea.sflag [#allocation6], 1
    %1428 = vsyncpa %s1427, 1

</llo_original>
